<compile_context>
chip_gen: v6e
topology: v6e:2x2x1
jax: 0.10.0
libtpu: 0.0.40
codegen_flags: <defaults>
</compile_context>

<pallas_src>
import functools

import jax
import jax.numpy as jnp
from jax.experimental import pallas as pl
from jax.experimental.pallas import tpu as pltpu


def _scores_kernel(x_ref, wvu_ref, bvu_ref, wwk_ref, s_ref, *, d, gate_dtype):
    # In-kernel bf16 cast of the streamed f32 tile (keeps HBM traffic to the
    # single f32 read of x; no separate pad/cast pass in the wrapper).
    x_bf = x_ref[...].astype(jnp.bfloat16)                               # (tile_n, L)

    # Fused gate projection: one bf16 MXU matmul computes both V and U branches.
    h = jnp.dot(x_bf, wvu_ref[...],
                preferred_element_type=jnp.float32) + bvu_ref[...]       # (tile_n, 2D) f32

    hv = h[:, :d].astype(gate_dtype)
    hu = h[:, d:].astype(gate_dtype)
    a_v = jnp.tanh(hv)
    # sigmoid(z) = 0.5 * (tanh(0.5 * z) + 1): single EUP push per element
    # (instead of exp + reciprocal); bf16 on v6e/v7x, f32 on older chips.
    a_u = 0.5 * (jnp.tanh(0.5 * hu) + 1.0)
    gated = (a_v * a_u).astype(jnp.bfloat16)                              # (tile_n, D)

    # Attention-weight projection directly in lane-dense (K, tile_n) layout:
    # contract D of (K, D) against D of (tile_n, D).  bf16 x bf16 -> one MXU pass.
    s_ref[...] = jax.lax.dot_general(
        wwk_ref[...], gated,
        dimension_numbers=(((1,), (1,)), ((), ())),
        preferred_element_type=jnp.float32)                               # (K, tile_n)
    # NOTE: the bw bias is intentionally omitted -- softmax over N (per row of
    # the (K, N) matrix) is invariant to a per-row constant shift.


def _softmax_kernel(s_ref, o_ref, *, n_valid):
    s = s_ref[...]                                                        # (K, n_pad) f32
    col = jax.lax.broadcasted_iota(jnp.int32, s.shape, 1)
    s = jnp.where(col < n_valid, s, -jnp.inf)                             # mask padded cols
    m = jnp.max(s, axis=1, keepdims=True)
    e = jnp.exp(s - m)                                                    # padded -> 0
    denom = jnp.sum(e, axis=1, keepdims=True)
    o_ref[...] = e / denom                                                # exact normalize


def _gate_dtype():
    """bf16 gating only where the VPU/EUP have native bf16 paths (v6e / v7x)."""
    try:
        kind = jax.devices()[0].device_kind.lower()
    except Exception:
        return jnp.bfloat16
    return jnp.bfloat16 if ("v6" in kind or "v7" in kind) else jnp.float32


def attention_forward(x, wv, bv, wu, bu, ww, bw, *, tile_n=2048, isNorm=True):
    """Gated-attention forward.

    x : (N, L) f32 instance features.
    wv, wu : (L, D) Linear weights (stored transposed), bv, bu : (D,).
    ww : (D, K), bw : (K,).
    Returns softmax-normalized attention of shape (K, N) (or raw scores if
    isNorm=False).
    """
    N, L = x.shape
    D = wv.shape[1]
    K = ww.shape[1]

    gate_dtype = _gate_dtype()
    gate_bytes = jnp.dtype(gate_dtype).itemsize

    # --- tile over N: 128-lane aligned; prefer >= 2 grid steps (v7x megacore) ---
    tile_n = max(128, (int(tile_n) // 128) * 128)
    if N > 128:
        tile_n = min(tile_n, ((pl.cdiv(N, 2) + 127) // 128) * 128)   # >= 2 tiles
    tile_n = min(tile_n, ((N + 127) // 128) * 128)

    # VMEM budget: streamed tiles + in-kernel temporaries + resident weights.
    resident_bytes = L * 2 * D * 2 + 2 * D * 4 + K * D * 2            # Wvu, bvu, Ww

    def step_bytes(t):
        return (2 * t * L * 4            # x tiles (f32, double-buffered)
                + t * L * 2              # in-kernel bf16 copy of the x tile
                + t * 2 * D * 4          # h (f32)
                + 3 * t * D * gate_bytes # a_v / a_u / gated
                + 2 * K * t * 4)         # output tiles (f32, double-buffered)

    # Keep the per-step footprint well inside v7x's 64 MiB per-core VMEM.
    while tile_n > 128 and step_bytes(tile_n) + resident_bytes > (48 << 20):
        tile_n -= 128

    n_tiles = pl.cdiv(N, tile_n)
    n_pad = n_tiles * tile_n

    # --- wrapper-side weight packing (layout plumbing only; x goes in untouched) ---
    wvu = jnp.concatenate([wv, wu], axis=1).astype(jnp.bfloat16)        # (L, 2D)
    bvu = jnp.concatenate([bv, bu], axis=0).reshape(1, 2 * D).astype(jnp.float32)
    wwk = ww.T.astype(jnp.bfloat16)                                     # (K, D)

    try:
        vmem_phys = int(pltpu.get_tpu_info().vmem_capacity_bytes)
    except Exception:
        vmem_phys = 64 << 20            # v7x per-TensorCore VMEM (smallest generation)
    vmem_limit = min(vmem_phys,
                     max(32 << 20, step_bytes(tile_n) + resident_bytes + (8 << 20)))

    const = lambda shape: pl.BlockSpec(shape, lambda i: (0,) * len(shape))

    cost = pl.CostEstimate(
        flops=2 * n_pad * L * (2 * D) + 2 * n_pad * D * K + 5 * n_pad * D,
        transcendentals=2 * n_pad * D,
        bytes_accessed=N * L * 4 + L * 2 * D * 2 + 2 * D * 4 + K * D * 2
        + K * n_pad * 4,
    )

    scores = pl.pallas_call(
        functools.partial(_scores_kernel, d=D, gate_dtype=gate_dtype),
        out_shape=jax.ShapeDtypeStruct((K, n_pad), jnp.float32),
        grid=(n_tiles,),
        in_specs=[
            pl.BlockSpec((tile_n, L), lambda i: (i, 0)),   # streamed f32 x tiles
            const((L, 2 * D)),                             # resident packed Wv|Wu (bf16)
            const((1, 2 * D)),                             # resident bv|bu (f32)
            const((K, D)),                                 # resident Ww as (K, D) bf16
        ],
        out_specs=pl.BlockSpec((K, tile_n), lambda i: (0, i)),
        compiler_params=pltpu.CompilerParams(
            dimension_semantics=("parallel",),
            vmem_limit_bytes=int(vmem_limit),
        ),
        cost_estimate=cost,
    )(x, wvu, bvu, wwk)

    if not isNorm:
        # Pre-softmax scores are exposed, so the bias must be applied here.
        return scores[:, :N] + bw.reshape(K, 1)

    out = pl.pallas_call(
        functools.partial(_softmax_kernel, n_valid=N),
        out_shape=jax.ShapeDtypeStruct((K, n_pad), jnp.float32),
        grid=(1,),
        in_specs=[pl.BlockSpec((K, n_pad), lambda i: (0, 0))],
        out_specs=pl.BlockSpec((K, n_pad), lambda i: (0, 0)),
    )(scores)

    return out[:, :N]


def xavier_normal(key, fan_in, fan_out):
    # nn.init.xavier_normal_ on a (fan_out, fan_in) Linear weight, stored (fan_in, fan_out).
    std = jnp.sqrt(2.0 / (fan_in + fan_out))
    return std * jax.random.normal(key, (fan_in, fan_out), dtype=jnp.float32)


if __name__ == "__main__":
    # Module-consistent shapes (defaults L=512, D=128, K=1); a small bag of
    # N=300 instances exercises the partial-tile / masking path and the
    # 2-grid-step (megacore) tiling.
    N, L, D, K = 300, 512, 128, 1

    key = jax.random.PRNGKey(0)
    kx, kv, ku, kw = jax.random.split(key, 4)

    x = jax.random.normal(kx, (N, L), dtype=jnp.float32)

    wv = xavier_normal(kv, L, D)                 # attention_V weight (L, D)
    bv = jnp.zeros((D,), dtype=jnp.float32)      # zeroed bias (initialize_weights)
    wu = xavier_normal(ku, L, D)                 # attention_U weight (L, D)
    bu = jnp.zeros((D,), dtype=jnp.float32)
    ww = xavier_normal(kw, D, K)                 # attention_weights weight (D, K)
    bw = jnp.zeros((K,), dtype=jnp.float32)

    out = attention_forward(x, wv, bv, wu, bu, ww, bw)
    out = jax.block_until_ready(out)
    assert out.shape == (K, N)

    # Matched-precision reference (mirrors the kernel's bf16 matmuls / gating).
    gd = _gate_dtype()
    xb = x.astype(jnp.bfloat16)
    wvu_ref = jnp.concatenate([wv, wu], axis=1).astype(jnp.bfloat16)
    h = jnp.dot(xb, wvu_ref, preferred_element_type=jnp.float32) + jnp.concatenate([bv, bu])
    a_v = jnp.tanh(h[:, :D].astype(gd))
    a_u = 0.5 * (jnp.tanh(0.5 * h[:, D:].astype(gd)) + 1.0)
    gated = (a_v * a_u).astype(jnp.bfloat16)
    s = jnp.dot(gated, ww.astype(jnp.bfloat16), preferred_element_type=jnp.float32)
    ref_matched = jax.nn.softmax(s.T, axis=1)
    assert jnp.allclose(out, ref_matched, atol=2e-4, rtol=2e-2), \
        float(jnp.max(jnp.abs(out - ref_matched)))

    # Pure f32 reference of the original module semantics (loose sanity check;
    # deviation is the acknowledged bf16-matmul precision trade-off).
    a_v32 = jnp.tanh(x @ wv + bv)
    a_u32 = jax.nn.sigmoid(x @ wu + bu)
    ref_f32 = jax.nn.softmax(((a_v32 * a_u32) @ ww + bw).T, axis=1)
    assert jnp.allclose(out, ref_f32, atol=1e-3, rtol=5e-2)

    # Each attention row sums to 1 (exact normalization in pass 2).
    assert jnp.allclose(out.sum(axis=1), 1.0, atol=1e-4)

    print("KERNEL_OK")
</pallas_src>

<mosaic_0001>
module attributes {stable_mosaic.version = 11 : i64} {
  func.func @_scores_kernel(%arg0: i32, %arg1: memref<256x512xf32, #tpu.memory_space<vmem>>, %arg2: memref<512x256xbf16, #tpu.memory_space<vmem>>, %arg3: memref<1x256xf32, #tpu.memory_space<vmem>>, %arg4: memref<1x128xbf16, #tpu.memory_space<vmem>>, %arg5: memref<1x256xf32, #tpu.memory_space<vmem>>) attributes {dimension_semantics = [#tpu.dimension_semantics<parallel>], iteration_bounds = array<i64: 2>, scalar_prefetch = 0 : i64, scratch_operands = 0 : i64, tpu.core_type = #tpu.core_type<tc>, window_params = [{transform_indices = @transform_0, window_bounds = array<i64: 256, 512>}, {pipeline_mode = #tpu.pipeline_mode<synchronous>, transform_indices = @transform_1, window_bounds = array<i64: 512, 256>}, {pipeline_mode = #tpu.pipeline_mode<synchronous>, transform_indices = @transform_2, window_bounds = array<i64: 1, 256>}, {pipeline_mode = #tpu.pipeline_mode<synchronous>, transform_indices = @transform_3, window_bounds = array<i64: 1, 128>}, {transform_indices = @transform_4, window_bounds = array<i64: 1, 256>}]} {
    %c0 = arith.constant 0 : index
    %c0_0 = arith.constant 0 : index
    %0 = vector.load %arg1[%c0, %c0_0] : memref<256x512xf32, #tpu.memory_space<vmem>>, vector<256x512xf32>
    %1 = arith.truncf %0 : vector<256x512xf32> to vector<256x512xbf16>
    %c0_1 = arith.constant 0 : index
    %c0_2 = arith.constant 0 : index
    %2 = vector.load %arg2[%c0_1, %c0_2] : memref<512x256xbf16, #tpu.memory_space<vmem>>, vector<512x256xbf16>
    %cst = arith.constant dense<0.000000e+00> : vector<256x256xf32>
    %3 = tpu.matmul %1, %2, %cst {dimension_numbers = #tpu.dot_dimension_numbers<[1], [0], [0], [1], [0, 0, 1, 1], [], []>} : vector<256x512xbf16>, vector<512x256xbf16>, vector<256x256xf32> -> vector<256x256xf32>
    %c0_3 = arith.constant 0 : index
    %c0_4 = arith.constant 0 : index
    %4 = vector.load %arg3[%c0_3, %c0_4] : memref<1x256xf32, #tpu.memory_space<vmem>>, vector<1x256xf32>
    %5 = vector.broadcast %4 : vector<1x256xf32> to vector<256x256xf32>
    %6 = arith.addf %3, %5 : vector<256x256xf32>
    %7 = vector.extract_strided_slice %6 {offsets = [0, 0], sizes = [256, 128], strides = [1, 1]} : vector<256x256xf32> to vector<256x128xf32>
    %8 = vector.extract_strided_slice %6 {offsets = [0, 128], sizes = [256, 128], strides = [1, 1]} : vector<256x256xf32> to vector<256x128xf32>
    %9 = math.tanh %7 : vector<256x128xf32>
    %cst_5 = arith.constant 5.000000e-01 : f32
    %10 = vector.broadcast %cst_5 : f32 to vector<256x128xf32>
    %11 = arith.mulf %10, %8 : vector<256x128xf32>
    %12 = math.tanh %11 : vector<256x128xf32>
    %cst_6 = arith.constant 1.000000e+00 : f32
    %13 = vector.broadcast %cst_6 : f32 to vector<256x128xf32>
    %14 = arith.addf %12, %13 : vector<256x128xf32>
    %cst_7 = arith.constant 5.000000e-01 : f32
    %15 = vector.broadcast %cst_7 : f32 to vector<256x128xf32>
    %16 = arith.mulf %15, %14 : vector<256x128xf32>
    %17 = arith.mulf %9, %16 : vector<256x128xf32>
    %18 = arith.truncf %17 : vector<256x128xf32> to vector<256x128xbf16>
    %c0_8 = arith.constant 0 : index
    %c0_9 = arith.constant 0 : index
    %19 = vector.load %arg4[%c0_8, %c0_9] : memref<1x128xbf16, #tpu.memory_space<vmem>>, vector<1x128xbf16>
    %cst_10 = arith.constant dense<0.000000e+00> : vector<1x256xf32>
    %20 = tpu.matmul %19, %18, %cst_10 {dimension_numbers = #tpu.dot_dimension_numbers<[1], [1], [0], [0], [0, 0, 1, 0], [], []>} : vector<1x128xbf16>, vector<256x128xbf16>, vector<1x256xf32> -> vector<1x256xf32>
    %c0_11 = arith.constant 0 : index
    %c0_12 = arith.constant 0 : index
    %21 = vector.load %arg5[%c0_11, %c0_12] : memref<1x256xf32, #tpu.memory_space<vmem>>, vector<1x256xf32>
    tpu.vector_store %arg5[%c0_11, %c0_12], %20 {strides = array<i32>} : memref<1x256xf32, #tpu.memory_space<vmem>>, vector<1x256xf32>,
    return
  }
  func.func @transform_0(%arg0: i32) -> (i32, i32) {
    %c0_i32 = arith.constant 0 : i32
    %c0_i32_0 = arith.constant 0 : i32
    return %arg0, %c0_i32 : i32, i32
  }
  func.func @transform_1(%arg0: i32) -> (i32, i32) {
    %c0_i32 = arith.constant 0 : i32
    %c0_i32_0 = arith.constant 0 : i32
    %c0_i32_1 = arith.constant 0 : i32
    return %c0_i32, %c0_i32_0 : i32, i32
  }
  func.func @transform_2(%arg0: i32) -> (i32, i32) {
    %c0_i32 = arith.constant 0 : i32
    %c0_i32_0 = arith.constant 0 : i32
    %c0_i32_1 = arith.constant 0 : i32
    return %c0_i32, %c0_i32_0 : i32, i32
  }
  func.func @transform_3(%arg0: i32) -> (i32, i32) {
    %c0_i32 = arith.constant 0 : i32
    %c0_i32_0 = arith.constant 0 : i32
    %c0_i32_1 = arith.constant 0 : i32
    return %c0_i32, %c0_i32_0 : i32, i32
  }
  func.func @transform_4(%arg0: i32) -> (i32, i32) {
    %c0_i32 = arith.constant 0 : i32
    %c0_i32_0 = arith.constant 0 : i32
    return %c0_i32, %arg0 : i32, i32
  }
}

</mosaic_0001>

<llo_original>
// kernel: tpu_custom_call.1
$region0: #{tpu_custom_call.1}
  #allocation0 [shape = 'u32[]', space=smem, size = 0x4, offset = 0x4, fixed_abs, tag = 'smem constant byte address 0x4 - core index']
  #allocation1 [shape = 'u32[144,128]{1,0:T(1,128)}', space=vmem, size = 0x12000, scoped, tag = 'internal scratch']
  %s0 = inlined_call_operand.hbm [shape: f32[300,512], index: 0, kind: input, shape index: {}]
  %s1 = inlined_call_operand.hbm [shape: bf16[512,256], index: 1, kind: input, shape index: {}]
  %s2 = inlined_call_operand.vmem [shape: f32[1,256], index: 2, kind: input, shape index: {}]
  %s3 = inlined_call_operand.vmem [shape: bf16[1,128], index: 3, kind: input, shape index: {}]
  %s4 = inlined_call_operand.hbm [shape: f32[1,512], index: 4, kind: output, shape index: {}]
  %s5 = sld [smem:[#allocation0]]
  $region57: #{tpu_custom_call.1} parent=0
    _
  %s7 = ssub.s32 1, %s5
  %s8 = scalar_select 0, %s7, %s5
  $region1: #{tpu_custom_call.1} parent=0
    #allocation2 [shape = 'u8[1048576]{0}', space=vmem, size = 0x100000, scoped, tag = 'input window, operand 0']
    #allocation3 [shape = 's32[2]{0}', space=sflag, size = 0x8, scoped, tag = 'scoped memory for tpu_custom_call.1']
    #allocation4 [shape = 's32[2]{0}', space=sflag, size = 0x8, scoped, tag = 'scoped memory for tpu_custom_call.1']
    #allocation5 [shape = 'u8[262144]{0}', space=vmem, size = 0x40000, scoped, tag = 'input window, operand 1, single buffered']
    #allocation6 [shape = 's32[1]{0}', space=sflag, size = 0x4, scoped, tag = 'scoped memory for tpu_custom_call.1']
    #allocation7 [shape = 'u8[2048]{0}', space=vmem, size = 0x800, scoped, tag = 'output window, operand 0']
    %9 = vsyncpa [#allocation3], 0
    %s10 = scalar_lea.sflag [#allocation3], 1
    %11 = vsyncpa %s10, 0
    %12 = vsyncpa [#allocation6], 0
    %13 = vsyncpa [#allocation4], 0
    %s14 = scalar_lea.sflag [#allocation4], 1
    %15 = vsyncpa %s14, 0
    loop: start=0, step=1, limit=4
    $region2: #{tpu_custom_call.1} parent=1 // loop_pre_header
      _
    $region3: #{tpu_custom_call.1} parent=1 // loop_header
      %s17 = sphi 0, %s21
      %p18 = scmp.ge.s32.totalorder %s17, 4
      %s27 = sphi 0, %s29
      %s30 = sphi 0, %s27
      %s31 = sphi 0, %s30
      %s47 = sphi 0, %s31
      %s51 = sphi 0, %s51
      %s53 = sphi 0, %s51
      %s54 = sphi 0, %s53
      %s68 = sphi 0, %s54
      %s72 = sphi 0, %s72
      %s74 = sphi 0, %s72
      %s75 = sphi 0, %s74
      %s89 = sphi 0, %s75
      %s93 = sphi 0, %s93
      %s95 = sphi 0, %s93
      %s96 = sphi 0, %s95
      %s110 = sphi 0, %s96
      %s116 = sphi 0, %s118
      %s119 = sphi 0, %s116
      %s120 = sphi 0, %s119
      %s136 = sphi 0, %s120
    $region4: #{tpu_custom_call.1} parent=1 // loop_header_branch
      %20 = sbr.rel (%p18) target = $region8
    $region5: #{tpu_custom_call.1} parent=1 // loop_body
      %s22 = ssub.s32 %s17, 1
      %s23 = ssub.s32 %s17, 2
      %s24 = sadd.s32 %s17, 1
      %s25 = ssub.s32 %s17, %s24
      %p26 = scmp.eq.s32.totalorder %s25, 0
      %s28 = sadd.s32 %s27, 1
      %s29 = scalar_select %p26, %s27, %s28
      %p32 = pneg %p26
      %p33 = scmp.eq.s32.totalorder %s17, 1
      %p34 = por %p32, %p33
      %p35 = scmp.ne.s32.totalorder %s27, %s30
      %p36 = scmp.eq.s32.totalorder %s17, 0
      %p37 = por %p35, %p36
      %p38 = scmp.ne.s32.totalorder %s27, %s30
      %p39 = scmp.eq.s32.totalorder %s22, 1
      %p40 = por %p38, %p39
      %p41 = scmp.ne.s32.totalorder %s30, %s31
      %p42 = scmp.eq.s32.totalorder %s22, 0
      %p43 = por %p41, %p42
      %p44 = scmp.ne.s32.totalorder %s30, %s31
      %p45 = scmp.eq.s32.totalorder %s23, 1
      %p46 = por %p44, %p45
      %p48 = scmp.ne.s32.totalorder %s31, %s47
      %p49 = scmp.eq.s32.totalorder %s23, 0
      %p50 = por %p48, %p49
      %s52 = sadd.s32 %s51, 1
      %p55 = scmp.eq.s32.totalorder %s17, 1
      %p56 = scmp.ne.s32.totalorder %s51, %s53
      %p57 = scmp.eq.s32.totalorder %s17, 0
      %p58 = por %p56, %p57
      %p59 = scmp.ne.s32.totalorder %s51, %s53
      %p60 = scmp.eq.s32.totalorder %s22, 1
      %p61 = por %p59, %p60
      %p62 = scmp.ne.s32.totalorder %s53, %s54
      %p63 = scmp.eq.s32.totalorder %s22, 0
      %p64 = por %p62, %p63
      %p65 = scmp.ne.s32.totalorder %s53, %s54
      %p66 = scmp.eq.s32.totalorder %s23, 1
      %p67 = por %p65, %p66
      %p69 = scmp.ne.s32.totalorder %s54, %s68
      %p70 = scmp.eq.s32.totalorder %s23, 0
      %p71 = por %p69, %p70
      %s73 = sadd.s32 %s72, 1
      %p76 = scmp.eq.s32.totalorder %s17, 1
      %p77 = scmp.ne.s32.totalorder %s72, %s74
      %p78 = scmp.eq.s32.totalorder %s17, 0
      %p79 = por %p77, %p78
      %p80 = scmp.ne.s32.totalorder %s72, %s74
      %p81 = scmp.eq.s32.totalorder %s22, 1
      %p82 = por %p80, %p81
      %p83 = scmp.ne.s32.totalorder %s74, %s75
      %p84 = scmp.eq.s32.totalorder %s22, 0
      %p85 = por %p83, %p84
      %p86 = scmp.ne.s32.totalorder %s74, %s75
      %p87 = scmp.eq.s32.totalorder %s23, 1
      %p88 = por %p86, %p87
      %p90 = scmp.ne.s32.totalorder %s75, %s89
      %p91 = scmp.eq.s32.totalorder %s23, 0
      %p92 = por %p90, %p91
      %s94 = sadd.s32 %s93, 1
      %p97 = scmp.eq.s32.totalorder %s17, 1
      %p98 = scmp.ne.s32.totalorder %s93, %s95
      %p99 = scmp.eq.s32.totalorder %s17, 0
      %p100 = por %p98, %p99
      %p101 = scmp.ne.s32.totalorder %s93, %s95
      %p102 = scmp.eq.s32.totalorder %s22, 1
      %p103 = por %p101, %p102
      %p104 = scmp.ne.s32.totalorder %s95, %s96
      %p105 = scmp.eq.s32.totalorder %s22, 0
      %p106 = por %p104, %p105
      %p107 = scmp.ne.s32.totalorder %s95, %s96
      %p108 = scmp.eq.s32.totalorder %s23, 1
      %p109 = por %p107, %p108
      %p111 = scmp.ne.s32.totalorder %s96, %s110
      %p112 = scmp.eq.s32.totalorder %s23, 0
      %p113 = por %p111, %p112
      %s114 = ssub.s32 %s17, %s24
      %p115 = scmp.eq.s32.totalorder %s114, 0
      %s117 = sadd.s32 %s116, 1
      %s118 = scalar_select %p115, %s116, %s117
      %p121 = pneg %p115
      %p122 = scmp.eq.s32.totalorder %s17, 1
      %p123 = por %p121, %p122
      %p124 = scmp.ne.s32.totalorder %s116, %s119
      %p125 = scmp.eq.s32.totalorder %s17, 0
      %p126 = por %p124, %p125
      %p127 = scmp.ne.s32.totalorder %s116, %s119
      %p128 = scmp.eq.s32.totalorder %s22, 1
      %p129 = por %p127, %p128
      %p130 = scmp.ne.s32.totalorder %s119, %s120
      %p131 = scmp.eq.s32.totalorder %s22, 0
      %p132 = por %p130, %p131
      %p133 = scmp.ne.s32.totalorder %s119, %s120
      %p134 = scmp.eq.s32.totalorder %s23, 1
      %p135 = por %p133, %p134
      %p137 = scmp.ne.s32.totalorder %s120, %s136
      %p138 = scmp.eq.s32.totalorder %s23, 0
      %p139 = por %p137, %p138
      %p140 = scmp.le.s32.totalorder 1, %s17
      %p141 = scmp.lt.s32.totalorder %s17, 3
      %p142 = pnand %p140, %p141
      %p143 = pneg %p142
      // Predicated region
      $region9: #{tpu_custom_call.1} parent=5 // pred_check
        _
      $region10: #{tpu_custom_call.1} parent=5 // pred_check_branch
        %145 = sbr.rel (%p142) target = $region12
      $region11: #{tpu_custom_call.1} parent=5 // pred_region
        %s146 = ssub.s32 %s17, 1
        // Predicated region
        $region13: #{tpu_custom_call.1} parent=11 // pred_check
          %p147 = pneg %p64
        $region14: #{tpu_custom_call.1} parent=11 // pred_check_branch
          %149 = sbr.rel (%p147) target = $region16
        $region15: #{tpu_custom_call.1} parent=11 // pred_region
          %s151 = ssub.s32 8192, 8192
          %152 = vsyncadd [#allocation6], %s151
          %s153 = sshll.u32 [#allocation5], 4
          %s154 = int_to_ptr.vmem [resolvable:$true] %s153
          %159 = dma.hbm_to_vmem [thread:$0]  %s1, 8192, %s154, [#allocation6], 128, 128, 8
        $region16: #{tpu_custom_call.1} parent=11 // pred_fallthru
          _
        // Predicated region
        $region17: #{tpu_custom_call.1} parent=11 // pred_check
          %p160 = pneg %p85
        $region18: #{tpu_custom_call.1} parent=11 // pred_check_branch
          %162 = sbr.rel (%p160) target = $region20
        $region19: #{tpu_custom_call.1} parent=11 // pred_region
          _
        $region20: #{tpu_custom_call.1} parent=11 // pred_fallthru
          _
        // Predicated region
        $region21: #{tpu_custom_call.1} parent=11 // pred_check
          %p163 = pneg %p106
        $region22: #{tpu_custom_call.1} parent=11 // pred_check_branch
          %165 = sbr.rel (%p163) target = $region24
        $region23: #{tpu_custom_call.1} parent=11 // pred_region
          _
        $region24: #{tpu_custom_call.1} parent=11 // pred_fallthru
          _
      $region12: #{tpu_custom_call.1} parent=5 // pred_fallthru
        _
      %p166 = scmp.lt.s32.totalorder %s17, 2
      // Predicated region
      $region25: #{tpu_custom_call.1} parent=5 // pred_check
        %p167 = pneg %p166
      $region26: #{tpu_custom_call.1} parent=5 // pred_check_branch
        %169 = sbr.rel (%p167) target = $region28
      $region27: #{tpu_custom_call.1} parent=5 // pred_region
        // Predicated region
        $region29: #{tpu_custom_call.1} parent=27 // pred_check
          %p170 = pneg %p37
        $region30: #{tpu_custom_call.1} parent=27 // pred_check_branch
          %172 = sbr.rel (%p170) target = $region32
        $region31: #{tpu_custom_call.1} parent=27 // pred_region
          %s173 = sand.u32 %s27, 1
          %s174 = scalar_lea.sflag [#allocation3], %s173
          %s175 = sand.u32 %s27, 1
          %s176 = smul.addr %s175, 1024
          %s177 = scalar_lea.vmem [#allocation2], %s176
          %s178 = smul.u32 32, %s17
          %s179 = ssub.s32 38, %s178
          %p180 = scmp.lt.s32.totalorder %s179, 32
          %s181 = scalar_select %p180, %s179, 32
          %s182 = smul.u32 128, %s181
          %s183 = smul.u32 %s182, 4
          %s185 = ssub.s32 16384, %s183
          %186 = vsyncadd %s174, %s185
          %p187 = scmp.ne.s32.totalorder 0, %s183
          %s188 = smul.addr %s178, 4
          %s189 = smul.addr %s188, 128
          %s190 = scalar_lea.hbm %s0, %s189
          %s191 = smul.u32 32, %s181
          %s192 = sshll.u32 %s177, 4
          %s193 = int_to_ptr.vmem [resolvable:$true] %s192
          %s194 = sshll.u32 %s191, 4
          %198 = dma.hbm_to_vmem [thread:$0]  (%p187), %s190, %s194, %s193, %s174, 512, 512, 32
        $region32: #{tpu_custom_call.1} parent=27 // pred_fallthru
          _
      $region28: #{tpu_custom_call.1} parent=5 // pred_fallthru
        _
      %p199 = scmp.le.s32.totalorder 1, %s17
      %p200 = scmp.lt.s32.totalorder %s17, 3
      %p201 = pnand %p199, %p200
      %p202 = pneg %p201
      // Predicated region
      $region33: #{tpu_custom_call.1} parent=5 // pred_check
        _
      $region34: #{tpu_custom_call.1} parent=5 // pred_check_branch
        %204 = sbr.rel (%p201) target = $region36
      $region35: #{tpu_custom_call.1} parent=5 // pred_region
        %s205 = ssub.s32 %s17, 1
        %s206 = sand.u32 %s30, 1
        %s207 = scalar_lea.sflag [#allocation3], %s206
        %s208 = sand.u32 %s30, 1
        %s209 = smul.addr %s208, 1024
        %s210 = scalar_lea.vmem [#allocation2], %s209
        // Predicated region
        $region37: #{tpu_custom_call.1} parent=35 // pred_check
          %p211 = pneg %p43
        $region38: #{tpu_custom_call.1} parent=35 // pred_check_branch
          %213 = sbr.rel (%p211) target = $region40
        $region39: #{tpu_custom_call.1} parent=35 // pred_region
          %214 = dma.done %s207, 16384
        $region40: #{tpu_custom_call.1} parent=35 // pred_fallthru
          _
        // Predicated region
        $region41: #{tpu_custom_call.1} parent=35 // pred_check
          %p215 = pneg %p64
        $region42: #{tpu_custom_call.1} parent=35 // pred_check_branch
          %217 = sbr.rel (%p215) target = $region44
        $region43: #{tpu_custom_call.1} parent=35 // pred_region
          %218 = dma.done [#allocation6], 8192
        $region44: #{tpu_custom_call.1} parent=35 // pred_fallthru
          _
        %s219 = sand.u32 %s30, 1
        %s220 = scalar_lea.sflag [#allocation3], %s219
        %s221 = sand.u32 %s30, 1
        %s222 = smul.addr %s221, 1024
        %s223 = scalar_lea.vmem [#allocation2], %s222
        %p224 = pneg %p43
        %p225 = pneg %p40
        %p226 = pneg %p64
        %p227 = pneg %p61
        %p228 = pneg %p85
        %p229 = pneg %p82
        %p230 = pneg %p106
        %p231 = pneg %p103
        %p232 = pneg %p132
        %p233 = pneg %p129
        %s234 = sand.u32 %s119, 1
        %s235 = scalar_lea.sflag [#allocation4], %s234
        %s236 = sand.u32 %s119, 1
        %s237 = smul.addr %s236, 2
        %s238 = scalar_lea.vmem [#allocation7], %s237
        %s239 = smul.u32 32, %s22
        %s240 = ssub.s32 38, %s239
        %p241 = scmp.lt.s32.totalorder %s240, 32
        %s242 = scalar_select %p241, %s240, 32
        %s243 = smul.u32 128, %s242
        %s244 = smul.u32 %s243, 4
        %s245 = smul.u32 2, %s22
        %v247 = vld [vmem:[%s210] sm:$0xff]
        %v248 = vld [vmem:[%s210 + $0x8] sm:$0xff]
        %v249 = vld [vmem:[%s210 + $0x10] sm:$0xff]
        %v250 = vld [vmem:[%s210 + $0x18] sm:$0xff]
        %v251 = vld [vmem:[%s210 + $0x20] sm:$0xff]
        %v252 = vld [vmem:[%s210 + $0x28] sm:$0xff]
        %v253 = vld [vmem:[%s210 + $0x30] sm:$0xff]
        %v254 = vld [vmem:[%s210 + $0x38] sm:$0xff]
        %v255 = vld [vmem:[%s210 + $0x40] sm:$0xff]
        %v256 = vld [vmem:[%s210 + $0x48] sm:$0xff]
        %v257 = vld [vmem:[%s210 + $0x50] sm:$0xff]
        %v258 = vld [vmem:[%s210 + $0x58] sm:$0xff]
        %v259 = vld [vmem:[%s210 + $0x60] sm:$0xff]
        %v260 = vld [vmem:[%s210 + $0x68] sm:$0xff]
        %v261 = vld [vmem:[%s210 + $0x70] sm:$0xff]
        %v262 = vld [vmem:[%s210 + $0x78] sm:$0xff]
        %v263 = vld [vmem:[%s210 + $0x80] sm:$0xff]
        %v264 = vld [vmem:[%s210 + $0x88] sm:$0xff]
        %v265 = vld [vmem:[%s210 + $0x90] sm:$0xff]
        %v266 = vld [vmem:[%s210 + $0x98] sm:$0xff]
        %v267 = vld [vmem:[%s210 + $0xa0] sm:$0xff]
        %v268 = vld [vmem:[%s210 + $0xa8] sm:$0xff]
        %v269 = vld [vmem:[%s210 + $0xb0] sm:$0xff]
        %v270 = vld [vmem:[%s210 + $0xb8] sm:$0xff]
        %v271 = vld [vmem:[%s210 + $0xc0] sm:$0xff]
        %v272 = vld [vmem:[%s210 + $0xc8] sm:$0xff]
        %v273 = vld [vmem:[%s210 + $0xd0] sm:$0xff]
        %v274 = vld [vmem:[%s210 + $0xd8] sm:$0xff]
        %v275 = vld [vmem:[%s210 + $0xe0] sm:$0xff]
        %v276 = vld [vmem:[%s210 + $0xe8] sm:$0xff]
        %v277 = vld [vmem:[%s210 + $0xf0] sm:$0xff]
        %v278 = vld [vmem:[%s210 + $0xf8] sm:$0xff]
        %v279 = vld [vmem:[%s210 + $0x100] sm:$0xff]
        %v280 = vld [vmem:[%s210 + $0x108] sm:$0xff]
        %v281 = vld [vmem:[%s210 + $0x110] sm:$0xff]
        %v282 = vld [vmem:[%s210 + $0x118] sm:$0xff]
        %v283 = vld [vmem:[%s210 + $0x120] sm:$0xff]
        %v284 = vld [vmem:[%s210 + $0x128] sm:$0xff]
        %v285 = vld [vmem:[%s210 + $0x130] sm:$0xff]
        %v286 = vld [vmem:[%s210 + $0x138] sm:$0xff]
        %v287 = vld [vmem:[%s210 + $0x140] sm:$0xff]
        %v288 = vld [vmem:[%s210 + $0x148] sm:$0xff]
        %v289 = vld [vmem:[%s210 + $0x150] sm:$0xff]
        %v290 = vld [vmem:[%s210 + $0x158] sm:$0xff]
        %v291 = vld [vmem:[%s210 + $0x160] sm:$0xff]
        %v292 = vld [vmem:[%s210 + $0x168] sm:$0xff]
        %v293 = vld [vmem:[%s210 + $0x170] sm:$0xff]
        %v294 = vld [vmem:[%s210 + $0x178] sm:$0xff]
        %v295 = vld [vmem:[%s210 + $0x180] sm:$0xff]
        %v296 = vld [vmem:[%s210 + $0x188] sm:$0xff]
        %v297 = vld [vmem:[%s210 + $0x190] sm:$0xff]
        %v298 = vld [vmem:[%s210 + $0x198] sm:$0xff]
        %v299 = vld [vmem:[%s210 + $0x1a0] sm:$0xff]
        %v300 = vld [vmem:[%s210 + $0x1a8] sm:$0xff]
        %v301 = vld [vmem:[%s210 + $0x1b0] sm:$0xff]
        %v302 = vld [vmem:[%s210 + $0x1b8] sm:$0xff]
        %v303 = vld [vmem:[%s210 + $0x1c0] sm:$0xff]
        %v304 = vld [vmem:[%s210 + $0x1c8] sm:$0xff]
        %v305 = vld [vmem:[%s210 + $0x1d0] sm:$0xff]
        %v306 = vld [vmem:[%s210 + $0x1d8] sm:$0xff]
        %v307 = vld [vmem:[%s210 + $0x1e0] sm:$0xff]
        %v308 = vld [vmem:[%s210 + $0x1e8] sm:$0xff]
        %v309 = vld [vmem:[%s210 + $0x1f0] sm:$0xff]
        %v310 = vld [vmem:[%s210 + $0x1f8] sm:$0xff]
        %v311 = vld [vmem:[%s210 + $0x200] sm:$0xff]
        %v312 = vld [vmem:[%s210 + $0x208] sm:$0xff]
        %v313 = vld [vmem:[%s210 + $0x210] sm:$0xff]
        %v314 = vld [vmem:[%s210 + $0x218] sm:$0xff]
        %v315 = vld [vmem:[%s210 + $0x220] sm:$0xff]
        %v316 = vld [vmem:[%s210 + $0x228] sm:$0xff]
        %v317 = vld [vmem:[%s210 + $0x230] sm:$0xff]
        %v318 = vld [vmem:[%s210 + $0x238] sm:$0xff]
        %v319 = vld [vmem:[%s210 + $0x240] sm:$0xff]
        %v320 = vld [vmem:[%s210 + $0x248] sm:$0xff]
        %v321 = vld [vmem:[%s210 + $0x250] sm:$0xff]
        %v322 = vld [vmem:[%s210 + $0x258] sm:$0xff]
        %v323 = vld [vmem:[%s210 + $0x260] sm:$0xff]
        %v324 = vld [vmem:[%s210 + $0x268] sm:$0xff]
        %v325 = vld [vmem:[%s210 + $0x270] sm:$0xff]
        %v326 = vld [vmem:[%s210 + $0x278] sm:$0xff]
        %v327 = vld [vmem:[%s210 + $0x280] sm:$0xff]
        %v328 = vld [vmem:[%s210 + $0x288] sm:$0xff]
        %v329 = vld [vmem:[%s210 + $0x290] sm:$0xff]
        %v330 = vld [vmem:[%s210 + $0x298] sm:$0xff]
        %v331 = vld [vmem:[%s210 + $0x2a0] sm:$0xff]
        %v332 = vld [vmem:[%s210 + $0x2a8] sm:$0xff]
        %v333 = vld [vmem:[%s210 + $0x2b0] sm:$0xff]
        %v334 = vld [vmem:[%s210 + $0x2b8] sm:$0xff]
        %v335 = vld [vmem:[%s210 + $0x2c0] sm:$0xff]
        %v336 = vld [vmem:[%s210 + $0x2c8] sm:$0xff]
        %v337 = vld [vmem:[%s210 + $0x2d0] sm:$0xff]
        %v338 = vld [vmem:[%s210 + $0x2d8] sm:$0xff]
        %v339 = vld [vmem:[%s210 + $0x2e0] sm:$0xff]
        %v340 = vld [vmem:[%s210 + $0x2e8] sm:$0xff]
        %v341 = vld [vmem:[%s210 + $0x2f0] sm:$0xff]
        %v342 = vld [vmem:[%s210 + $0x2f8] sm:$0xff]
        %v343 = vld [vmem:[%s210 + $0x300] sm:$0xff]
        %v344 = vld [vmem:[%s210 + $0x308] sm:$0xff]
        %v345 = vld [vmem:[%s210 + $0x310] sm:$0xff]
        %v346 = vld [vmem:[%s210 + $0x318] sm:$0xff]
        %v347 = vld [vmem:[%s210 + $0x320] sm:$0xff]
        %v348 = vld [vmem:[%s210 + $0x328] sm:$0xff]
        %v349 = vld [vmem:[%s210 + $0x330] sm:$0xff]
        %v350 = vld [vmem:[%s210 + $0x338] sm:$0xff]
        %v351 = vld [vmem:[%s210 + $0x340] sm:$0xff]
        %v352 = vld [vmem:[%s210 + $0x348] sm:$0xff]
        %v353 = vld [vmem:[%s210 + $0x350] sm:$0xff]
        %v354 = vld [vmem:[%s210 + $0x358] sm:$0xff]
        %v355 = vld [vmem:[%s210 + $0x360] sm:$0xff]
        %v356 = vld [vmem:[%s210 + $0x368] sm:$0xff]
        %v357 = vld [vmem:[%s210 + $0x370] sm:$0xff]
        %v358 = vld [vmem:[%s210 + $0x378] sm:$0xff]
        %v359 = vld [vmem:[%s210 + $0x380] sm:$0xff]
        %v360 = vld [vmem:[%s210 + $0x388] sm:$0xff]
        %v361 = vld [vmem:[%s210 + $0x390] sm:$0xff]
        %v362 = vld [vmem:[%s210 + $0x398] sm:$0xff]
        %v363 = vld [vmem:[%s210 + $0x3a0] sm:$0xff]
        %v364 = vld [vmem:[%s210 + $0x3a8] sm:$0xff]
        %v365 = vld [vmem:[%s210 + $0x3b0] sm:$0xff]
        %v366 = vld [vmem:[%s210 + $0x3b8] sm:$0xff]
        %v367 = vld [vmem:[%s210 + $0x3c0] sm:$0xff]
        %v368 = vld [vmem:[%s210 + $0x3c8] sm:$0xff]
        %v369 = vld [vmem:[%s210 + $0x3d0] sm:$0xff]
        %v370 = vld [vmem:[%s210 + $0x3d8] sm:$0xff]
        %v371 = vld [vmem:[%s210 + $0x3e0] sm:$0xff]
        %v372 = vld [vmem:[%s210 + $0x3e8] sm:$0xff]
        %v373 = vld [vmem:[%s210 + $0x3f0] sm:$0xff]
        %v374 = vld [vmem:[%s210 + $0x3f8] sm:$0xff]
        %v375 = vpack.c.bf16 %v251, %v247
        %v376 = vpack.c.bf16 %v252, %v248
        %v377 = vpack.c.bf16 %v253, %v249
        %v378 = vpack.c.bf16 %v254, %v250
        %v379 = vpack.c.bf16 %v259, %v255
        %v380 = vpack.c.bf16 %v260, %v256
        %v381 = vpack.c.bf16 %v261, %v257
        %v382 = vpack.c.bf16 %v262, %v258
        %v383 = vpack.c.bf16 %v267, %v263
        %v384 = vpack.c.bf16 %v268, %v264
        %v385 = vpack.c.bf16 %v269, %v265
        %v386 = vpack.c.bf16 %v270, %v266
        %v387 = vpack.c.bf16 %v275, %v271
        %v388 = vpack.c.bf16 %v276, %v272
        %v389 = vpack.c.bf16 %v277, %v273
        %v390 = vpack.c.bf16 %v278, %v274
        %v391 = vpack.c.bf16 %v283, %v279
        %v392 = vpack.c.bf16 %v284, %v280
        %v393 = vpack.c.bf16 %v285, %v281
        %v394 = vpack.c.bf16 %v286, %v282
        %v395 = vpack.c.bf16 %v291, %v287
        %v396 = vpack.c.bf16 %v292, %v288
        %v397 = vpack.c.bf16 %v293, %v289
        %v398 = vpack.c.bf16 %v294, %v290
        %v399 = vpack.c.bf16 %v299, %v295
        %v400 = vpack.c.bf16 %v300, %v296
        %v401 = vpack.c.bf16 %v301, %v297
        %v402 = vpack.c.bf16 %v302, %v298
        %v403 = vpack.c.bf16 %v307, %v303
        %v404 = vpack.c.bf16 %v308, %v304
        %v405 = vpack.c.bf16 %v309, %v305
        %v406 = vpack.c.bf16 %v310, %v306
        %v407 = vpack.c.bf16 %v315, %v311
        %v408 = vpack.c.bf16 %v316, %v312
        %v409 = vpack.c.bf16 %v317, %v313
        %v410 = vpack.c.bf16 %v318, %v314
        %v411 = vpack.c.bf16 %v323, %v319
        %v412 = vpack.c.bf16 %v324, %v320
        %v413 = vpack.c.bf16 %v325, %v321
        %v414 = vpack.c.bf16 %v326, %v322
        %v415 = vpack.c.bf16 %v331, %v327
        %v416 = vpack.c.bf16 %v332, %v328
        %v417 = vpack.c.bf16 %v333, %v329
        %v418 = vpack.c.bf16 %v334, %v330
        %v419 = vpack.c.bf16 %v339, %v335
        %v420 = vpack.c.bf16 %v340, %v336
        %v421 = vpack.c.bf16 %v341, %v337
        %v422 = vpack.c.bf16 %v342, %v338
        %v423 = vpack.c.bf16 %v347, %v343
        %v424 = vpack.c.bf16 %v348, %v344
        %v425 = vpack.c.bf16 %v349, %v345
        %v426 = vpack.c.bf16 %v350, %v346
        %v427 = vpack.c.bf16 %v355, %v351
        %v428 = vpack.c.bf16 %v356, %v352
        %v429 = vpack.c.bf16 %v357, %v353
        %v430 = vpack.c.bf16 %v358, %v354
        %v431 = vpack.c.bf16 %v363, %v359
        %v432 = vpack.c.bf16 %v364, %v360
        %v433 = vpack.c.bf16 %v365, %v361
        %v434 = vpack.c.bf16 %v366, %v362
        %v435 = vpack.c.bf16 %v371, %v367
        %v436 = vpack.c.bf16 %v372, %v368
        %v437 = vpack.c.bf16 %v373, %v369
        %v438 = vpack.c.bf16 %v374, %v370
        %v439 = vld [vmem:[#allocation5] sm:$0xff]
        %v440 = vld [vmem:[#allocation5 + $0x8] sm:$0xff]
        %v441 = vld [vmem:[#allocation5 + $0x10] sm:$0xff]
        %v442 = vld [vmem:[#allocation5 + $0x18] sm:$0xff]
        %v443 = vld [vmem:[#allocation5 + $0x20] sm:$0xff]
        %v444 = vld [vmem:[#allocation5 + $0x28] sm:$0xff]
        %v445 = vld [vmem:[#allocation5 + $0x30] sm:$0xff]
        %v446 = vld [vmem:[#allocation5 + $0x38] sm:$0xff]
        %v447 = vld [vmem:[#allocation5 + $0x40] sm:$0xff]
        %v448 = vld [vmem:[#allocation5 + $0x48] sm:$0xff]
        %v449 = vld [vmem:[#allocation5 + $0x50] sm:$0xff]
        %v450 = vld [vmem:[#allocation5 + $0x58] sm:$0xff]
        %v451 = vld [vmem:[#allocation5 + $0x60] sm:$0xff]
        %v452 = vld [vmem:[#allocation5 + $0x68] sm:$0xff]
        %v453 = vld [vmem:[#allocation5 + $0x70] sm:$0xff]
        %v454 = vld [vmem:[#allocation5 + $0x78] sm:$0xff]
        %v455 = vld [vmem:[#allocation5 + $0x80] sm:$0xff]
        %v456 = vld [vmem:[#allocation5 + $0x88] sm:$0xff]
        %v457 = vld [vmem:[#allocation5 + $0x90] sm:$0xff]
        %v458 = vld [vmem:[#allocation5 + $0x98] sm:$0xff]
        %v459 = vld [vmem:[#allocation5 + $0xa0] sm:$0xff]
        %v460 = vld [vmem:[#allocation5 + $0xa8] sm:$0xff]
        %v461 = vld [vmem:[#allocation5 + $0xb0] sm:$0xff]
        %v462 = vld [vmem:[#allocation5 + $0xb8] sm:$0xff]
        %v463 = vld [vmem:[#allocation5 + $0xc0] sm:$0xff]
        %v464 = vld [vmem:[#allocation5 + $0xc8] sm:$0xff]
        %v465 = vld [vmem:[#allocation5 + $0xd0] sm:$0xff]
        %v466 = vld [vmem:[#allocation5 + $0xd8] sm:$0xff]
        %v467 = vld [vmem:[#allocation5 + $0xe0] sm:$0xff]
        %v468 = vld [vmem:[#allocation5 + $0xe8] sm:$0xff]
        %v469 = vld [vmem:[#allocation5 + $0xf0] sm:$0xff]
        %v470 = vld [vmem:[#allocation5 + $0xf8] sm:$0xff]
        %v471 = vld [vmem:[#allocation5 + $0x100] sm:$0xff]
        %v472 = vld [vmem:[#allocation5 + $0x108] sm:$0xff]
        %v473 = vld [vmem:[#allocation5 + $0x110] sm:$0xff]
        %v474 = vld [vmem:[#allocation5 + $0x118] sm:$0xff]
        %v475 = vld [vmem:[#allocation5 + $0x120] sm:$0xff]
        %v476 = vld [vmem:[#allocation5 + $0x128] sm:$0xff]
        %v477 = vld [vmem:[#allocation5 + $0x130] sm:$0xff]
        %v478 = vld [vmem:[#allocation5 + $0x138] sm:$0xff]
        %v479 = vld [vmem:[#allocation5 + $0x140] sm:$0xff]
        %v480 = vld [vmem:[#allocation5 + $0x148] sm:$0xff]
        %v481 = vld [vmem:[#allocation5 + $0x150] sm:$0xff]
        %v482 = vld [vmem:[#allocation5 + $0x158] sm:$0xff]
        %v483 = vld [vmem:[#allocation5 + $0x160] sm:$0xff]
        %v484 = vld [vmem:[#allocation5 + $0x168] sm:$0xff]
        %v485 = vld [vmem:[#allocation5 + $0x170] sm:$0xff]
        %v486 = vld [vmem:[#allocation5 + $0x178] sm:$0xff]
        %v487 = vld [vmem:[#allocation5 + $0x180] sm:$0xff]
        %v488 = vld [vmem:[#allocation5 + $0x188] sm:$0xff]
        %v489 = vld [vmem:[#allocation5 + $0x190] sm:$0xff]
        %v490 = vld [vmem:[#allocation5 + $0x198] sm:$0xff]
        %v491 = vld [vmem:[#allocation5 + $0x1a0] sm:$0xff]
        %v492 = vld [vmem:[#allocation5 + $0x1a8] sm:$0xff]
        %v493 = vld [vmem:[#allocation5 + $0x1b0] sm:$0xff]
        %v494 = vld [vmem:[#allocation5 + $0x1b8] sm:$0xff]
        %v495 = vld [vmem:[#allocation5 + $0x1c0] sm:$0xff]
        %v496 = vld [vmem:[#allocation5 + $0x1c8] sm:$0xff]
        %v497 = vld [vmem:[#allocation5 + $0x1d0] sm:$0xff]
        %v498 = vld [vmem:[#allocation5 + $0x1d8] sm:$0xff]
        %v499 = vld [vmem:[#allocation5 + $0x1e0] sm:$0xff]
        %v500 = vld [vmem:[#allocation5 + $0x1e8] sm:$0xff]
        %v501 = vld [vmem:[#allocation5 + $0x1f0] sm:$0xff]
        %v502 = vld [vmem:[#allocation5 + $0x1f8] sm:$0xff]
        %v503 = vld [vmem:[%s2] sm:$0x3]
        %v505 = vlaneseq
        %v506 = vshrl.u32 %v505, 7
        %v507 = vsub.s32 0, %v506
        %v508 = vrot.slane %v503, %v507
        %v509 = vlaneseq
        %v510 = vshrl.u32 %v509, 7
        %v511 = vsub.s32 1, %v510
        %v512 = vrot.slane %v503, %v511
        %v579 = vunpack.c.l.b16 %v439
        %v580 = vunpack.c.h.b16 %v439
        %v581 = vunpack.c.l.b16 %v440
        %v582 = vunpack.c.h.b16 %v440
        %v583 = vunpack.c.l.b16 %v441
        %v584 = vunpack.c.h.b16 %v441
        %v585 = vunpack.c.l.b16 %v442
        %v586 = vunpack.c.h.b16 %v442
        %v587 = vunpack.c.l.b16 %v443
        %v588 = vunpack.c.h.b16 %v443
        %v589 = vunpack.c.l.b16 %v444
        %v590 = vunpack.c.h.b16 %v444
        %v591 = vunpack.c.l.b16 %v445
        %v592 = vunpack.c.h.b16 %v445
        %v593 = vunpack.c.l.b16 %v446
        %v594 = vunpack.c.h.b16 %v446
        %v595 = vunpack.c.l.b16 %v447
        %v596 = vunpack.c.h.b16 %v447
        %v597 = vunpack.c.l.b16 %v448
        %v598 = vunpack.c.h.b16 %v448
        %v599 = vunpack.c.l.b16 %v449
        %v600 = vunpack.c.h.b16 %v449
        %v601 = vunpack.c.l.b16 %v450
        %v602 = vunpack.c.h.b16 %v450
        %v603 = vunpack.c.l.b16 %v451
        %v604 = vunpack.c.h.b16 %v451
        %v605 = vunpack.c.l.b16 %v452
        %v606 = vunpack.c.h.b16 %v452
        %v607 = vunpack.c.l.b16 %v453
        %v608 = vunpack.c.h.b16 %v453
        %v609 = vunpack.c.l.b16 %v454
        %v610 = vunpack.c.h.b16 %v454
        %v611 = vunpack.c.l.b16 %v455
        %v612 = vunpack.c.h.b16 %v455
        %v613 = vunpack.c.l.b16 %v456
        %v614 = vunpack.c.h.b16 %v456
        %v615 = vunpack.c.l.b16 %v457
        %v616 = vunpack.c.h.b16 %v457
        %v617 = vunpack.c.l.b16 %v458
        %v618 = vunpack.c.h.b16 %v458
        %v619 = vunpack.c.l.b16 %v459
        %v620 = vunpack.c.h.b16 %v459
        %v621 = vunpack.c.l.b16 %v460
        %v622 = vunpack.c.h.b16 %v460
        %v623 = vunpack.c.l.b16 %v461
        %v624 = vunpack.c.h.b16 %v461
        %v625 = vunpack.c.l.b16 %v462
        %v626 = vunpack.c.h.b16 %v462
        %v627 = vunpack.c.l.b16 %v463
        %v628 = vunpack.c.h.b16 %v463
        %v629 = vunpack.c.l.b16 %v464
        %v630 = vunpack.c.h.b16 %v464
        %v631 = vunpack.c.l.b16 %v465
        %v632 = vunpack.c.h.b16 %v465
        %v633 = vunpack.c.l.b16 %v466
        %v634 = vunpack.c.h.b16 %v466
        %v635 = vunpack.c.l.b16 %v467
        %v636 = vunpack.c.h.b16 %v467
        %v637 = vunpack.c.l.b16 %v468
        %v638 = vunpack.c.h.b16 %v468
        %v639 = vunpack.c.l.b16 %v469
        %v640 = vunpack.c.h.b16 %v469
        %v641 = vunpack.c.l.b16 %v470
        %v642 = vunpack.c.h.b16 %v470
        %v643 = vunpack.c.l.b16 %v471
        %v644 = vunpack.c.h.b16 %v471
        %v645 = vunpack.c.l.b16 %v472
        %v646 = vunpack.c.h.b16 %v472
        %v647 = vunpack.c.l.b16 %v473
        %v648 = vunpack.c.h.b16 %v473
        %v649 = vunpack.c.l.b16 %v474
        %v650 = vunpack.c.h.b16 %v474
        %v651 = vunpack.c.l.b16 %v475
        %v652 = vunpack.c.h.b16 %v475
        %v653 = vunpack.c.l.b16 %v476
        %v654 = vunpack.c.h.b16 %v476
        %v655 = vunpack.c.l.b16 %v477
        %v656 = vunpack.c.h.b16 %v477
        %v657 = vunpack.c.l.b16 %v478
        %v658 = vunpack.c.h.b16 %v478
        %v659 = vunpack.c.l.b16 %v479
        %v660 = vunpack.c.h.b16 %v479
        %v661 = vunpack.c.l.b16 %v480
        %v662 = vunpack.c.h.b16 %v480
        %v663 = vunpack.c.l.b16 %v481
        %v664 = vunpack.c.h.b16 %v481
        %v665 = vunpack.c.l.b16 %v482
        %v666 = vunpack.c.h.b16 %v482
        %v667 = vunpack.c.l.b16 %v483
        %v668 = vunpack.c.h.b16 %v483
        %v669 = vunpack.c.l.b16 %v484
        %v670 = vunpack.c.h.b16 %v484
        %v671 = vunpack.c.l.b16 %v485
        %v672 = vunpack.c.h.b16 %v485
        %v673 = vunpack.c.l.b16 %v486
        %v674 = vunpack.c.h.b16 %v486
        %v675 = vunpack.c.l.b16 %v487
        %v676 = vunpack.c.h.b16 %v487
        %v677 = vunpack.c.l.b16 %v488
        %v678 = vunpack.c.h.b16 %v488
        %v679 = vunpack.c.l.b16 %v489
        %v680 = vunpack.c.h.b16 %v489
        %v681 = vunpack.c.l.b16 %v490
        %v682 = vunpack.c.h.b16 %v490
        %v683 = vunpack.c.l.b16 %v491
        %v684 = vunpack.c.h.b16 %v491
        %v685 = vunpack.c.l.b16 %v492
        %v686 = vunpack.c.h.b16 %v492
        %v687 = vunpack.c.l.b16 %v493
        %v688 = vunpack.c.h.b16 %v493
        %v689 = vunpack.c.l.b16 %v494
        %v690 = vunpack.c.h.b16 %v494
        %v691 = vunpack.c.l.b16 %v495
        %v692 = vunpack.c.h.b16 %v495
        %v693 = vunpack.c.l.b16 %v496
        %v694 = vunpack.c.h.b16 %v496
        %v695 = vunpack.c.l.b16 %v497
        %v696 = vunpack.c.h.b16 %v497
        %v697 = vunpack.c.l.b16 %v498
        %v698 = vunpack.c.h.b16 %v498
        %v699 = vunpack.c.l.b16 %v499
        %v700 = vunpack.c.h.b16 %v499
        %v701 = vunpack.c.l.b16 %v500
        %v702 = vunpack.c.h.b16 %v500
        %v703 = vunpack.c.l.b16 %v501
        %v704 = vunpack.c.h.b16 %v501
        %v705 = vunpack.c.l.b16 %v502
        %v706 = vunpack.c.h.b16 %v502
        %v707 = vpack.c.b16 %v581, %v579
        %v708 = vpack.c.b16 %v582, %v580
        %v709 = vpack.c.b16 %v585, %v583
        %v710 = vpack.c.b16 %v586, %v584
        %v711 = vpack.c.b16 %v589, %v587
        %v712 = vpack.c.b16 %v590, %v588
        %v713 = vpack.c.b16 %v593, %v591
        %v714 = vpack.c.b16 %v594, %v592
        %v715 = vpack.c.b16 %v597, %v595
        %v716 = vpack.c.b16 %v598, %v596
        %v717 = vpack.c.b16 %v601, %v599
        %v718 = vpack.c.b16 %v602, %v600
        %v719 = vpack.c.b16 %v605, %v603
        %v720 = vpack.c.b16 %v606, %v604
        %v721 = vpack.c.b16 %v609, %v607
        %v722 = vpack.c.b16 %v610, %v608
        %v723 = vpack.c.b16 %v613, %v611
        %v724 = vpack.c.b16 %v614, %v612
        %v725 = vpack.c.b16 %v617, %v615
        %v726 = vpack.c.b16 %v618, %v616
        %v727 = vpack.c.b16 %v621, %v619
        %v728 = vpack.c.b16 %v622, %v620
        %v729 = vpack.c.b16 %v625, %v623
        %v730 = vpack.c.b16 %v626, %v624
        %v731 = vpack.c.b16 %v629, %v627
        %v732 = vpack.c.b16 %v630, %v628
        %v733 = vpack.c.b16 %v633, %v631
        %v734 = vpack.c.b16 %v634, %v632
        %v735 = vpack.c.b16 %v637, %v635
        %v736 = vpack.c.b16 %v638, %v636
        %v737 = vpack.c.b16 %v641, %v639
        %v738 = vpack.c.b16 %v642, %v640
        %v739 = vpack.c.b16 %v645, %v643
        %v740 = vpack.c.b16 %v646, %v644
        %v741 = vpack.c.b16 %v649, %v647
        %v742 = vpack.c.b16 %v650, %v648
        %v743 = vpack.c.b16 %v653, %v651
        %v744 = vpack.c.b16 %v654, %v652
        %v745 = vpack.c.b16 %v657, %v655
        %v746 = vpack.c.b16 %v658, %v656
        %v747 = vpack.c.b16 %v661, %v659
        %v748 = vpack.c.b16 %v662, %v660
        %v749 = vpack.c.b16 %v665, %v663
        %v750 = vpack.c.b16 %v666, %v664
        %v751 = vpack.c.b16 %v669, %v667
        %v752 = vpack.c.b16 %v670, %v668
        %v753 = vpack.c.b16 %v673, %v671
        %v754 = vpack.c.b16 %v674, %v672
        %v755 = vpack.c.b16 %v677, %v675
        %v756 = vpack.c.b16 %v678, %v676
        %v757 = vpack.c.b16 %v681, %v679
        %v758 = vpack.c.b16 %v682, %v680
        %v759 = vpack.c.b16 %v685, %v683
        %v760 = vpack.c.b16 %v686, %v684
        %v761 = vpack.c.b16 %v689, %v687
        %v762 = vpack.c.b16 %v690, %v688
        %v763 = vpack.c.b16 %v693, %v691
        %v764 = vpack.c.b16 %v694, %v692
        %v765 = vpack.c.b16 %v697, %v695
        %v766 = vpack.c.b16 %v698, %v696
        %v767 = vpack.c.b16 %v701, %v699
        %v768 = vpack.c.b16 %v702, %v700
        %v769 = vpack.c.b16 %v705, %v703
        %v770 = vpack.c.b16 %v706, %v704
        %835 = vmatprep.subr.bf16.mxu0 %v722
        %836 = vmatpush1.bf16.msra.mxu0 %v721
        %837 = vmatprep.subr.bf16.mxu0 %v720
        %838 = vmatpush1.bf16.msra.mxu0 %v719
        %839 = vmatprep.subr.bf16.mxu0 %v718
        %840 = vmatpush1.bf16.msra.mxu0 %v717
        %841 = vmatprep.subr.bf16.mxu0 %v716
        %842 = vmatpush1.bf16.msra.mxu0 %v715
        %843 = vmatprep.subr.bf16.mxu0 %v714
        %844 = vmatpush1.bf16.msra.mxu0 %v713
        %845 = vmatprep.subr.bf16.mxu0 %v712
        %846 = vmatpush1.bf16.msra.mxu0 %v711
        %847 = vmatprep.subr.bf16.mxu0 %v710
        %848 = vmatpush1.bf16.msra.mxu0 %v709
        %849 = vmatprep.subr.bf16.mxu0 %v708
        %850 = vmatpush1.bf16.msra.mxu0 %v707
        %851 = vmatprep.subr.bf16.mxu0 %v738
        %852 = vmatpush2.bf16.msra.mxu0 %v737
        %853 = vmatprep.subr.bf16.mxu0 %v736
        %854 = vmatpush2.bf16.msra.mxu0 %v735
        %855 = vmatprep.subr.bf16.mxu0 %v734
        %856 = vmatpush2.bf16.msra.mxu0 %v733
        %857 = vmatprep.subr.bf16.mxu0 %v732
        %858 = vmatpush2.bf16.msra.mxu0 %v731
        %859 = vmatprep.subr.bf16.mxu0 %v730
        %860 = vmatpush2.bf16.msra.mxu0 %v729
        %861 = vmatprep.subr.bf16.mxu0 %v728
        %862 = vmatpush2.bf16.msra.mxu0 %v727
        %863 = vmatprep.subr.bf16.mxu0 %v726
        %864 = vmatpush2.bf16.msra.mxu0 %v725
        %865 = vmatprep.subr.bf16.mxu0 %v724
        %866 = vmatpush2.bf16.msra.mxu0 %v723
        %867 = vmatprep.mubr.bf16.mxu0 %v376
        %868 = vmatmul.mubr.bf16.gmra.mxu0 %v375
        %v869 = vpop.f32.mrf.mxu0
        %v870 = vadd.f32 %v508, %v869
        %v871 = vpop.f32.mrf.mxu0
        %v872 = vadd.f32 %v512, %v871
        %v873 = vpop.f32.mrf.mxu0
        %v874 = vadd.f32 %v508, %v873
        %v875 = vpop.f32.mrf.mxu0
        %v876 = vadd.f32 %v512, %v875
        %877 = vmatprep.mubr.bf16.mxu0 %v380
        %878 = vmatmul.mubr.bf16.gmra.mxu0 %v379
        %v879 = vpop.f32.mrf.mxu0
        %v880 = vadd.f32 %v508, %v879
        %v881 = vpop.f32.mrf.mxu0
        %v882 = vadd.f32 %v512, %v881
        %v883 = vpop.f32.mrf.mxu0
        %v884 = vadd.f32 %v508, %v883
        %v885 = vpop.f32.mrf.mxu0
        %v886 = vadd.f32 %v512, %v885
        %887 = vmatprep.mubr.bf16.mxu0 %v384
        %888 = vmatmul.mubr.bf16.gmra.mxu0 %v383
        %v889 = vpop.f32.mrf.mxu0
        %v890 = vadd.f32 %v508, %v889
        %v891 = vpop.f32.mrf.mxu0
        %v892 = vadd.f32 %v512, %v891
        %v893 = vpop.f32.mrf.mxu0
        %v894 = vadd.f32 %v508, %v893
        %v895 = vpop.f32.mrf.mxu0
        %v896 = vadd.f32 %v512, %v895
        %897 = vmatprep.mubr.bf16.mxu0 %v388
        %898 = vmatmul.mubr.bf16.gmra.mxu0 %v387
        %v899 = vpop.f32.mrf.mxu0
        %v900 = vadd.f32 %v508, %v899
        %v901 = vpop.f32.mrf.mxu0
        %v902 = vadd.f32 %v512, %v901
        %v903 = vpop.f32.mrf.mxu0
        %v904 = vadd.f32 %v508, %v903
        %v905 = vpop.f32.mrf.mxu0
        %v906 = vadd.f32 %v512, %v905
        %907 = vmatprep.mubr.bf16.mxu0 %v392
        %908 = vmatmul.mubr.bf16.gmra.mxu0 %v391
        %v909 = vpop.f32.mrf.mxu0
        %v910 = vadd.f32 %v508, %v909
        %v911 = vpop.f32.mrf.mxu0
        %v912 = vadd.f32 %v512, %v911
        %v913 = vpop.f32.mrf.mxu0
        %v914 = vadd.f32 %v508, %v913
        %v915 = vpop.f32.mrf.mxu0
        %v916 = vadd.f32 %v512, %v915
        %917 = vmatprep.mubr.bf16.mxu0 %v396
        %918 = vmatmul.mubr.bf16.gmra.mxu0 %v395
        %v919 = vpop.f32.mrf.mxu0
        %v920 = vadd.f32 %v508, %v919
        %v921 = vpop.f32.mrf.mxu0
        %v922 = vadd.f32 %v512, %v921
        %v923 = vpop.f32.mrf.mxu0
        %v924 = vadd.f32 %v508, %v923
        %v925 = vpop.f32.mrf.mxu0
        %v926 = vadd.f32 %v512, %v925
        %927 = vmatprep.mubr.bf16.mxu0 %v400
        %928 = vmatmul.mubr.bf16.gmra.mxu0 %v399
        %v929 = vpop.f32.mrf.mxu0
        %v930 = vadd.f32 %v508, %v929
        %v931 = vpop.f32.mrf.mxu0
        %v932 = vadd.f32 %v512, %v931
        %v933 = vpop.f32.mrf.mxu0
        %v934 = vadd.f32 %v508, %v933
        %v935 = vpop.f32.mrf.mxu0
        %v936 = vadd.f32 %v512, %v935
        %937 = vmatprep.mubr.bf16.mxu0 %v404
        %938 = vmatmul.mubr.bf16.gmra.mxu0 %v403
        %v939 = vpop.f32.mrf.mxu0
        %v940 = vadd.f32 %v508, %v939
        %v941 = vpop.f32.mrf.mxu0
        %v942 = vadd.f32 %v512, %v941
        %v943 = vpop.f32.mrf.mxu0
        %v944 = vadd.f32 %v508, %v943
        %v945 = vpop.f32.mrf.mxu0
        %v946 = vadd.f32 %v512, %v945
        %947 = vmatprep.mubr.bf16.mxu0 %v408
        %948 = vmatmul.mubr.bf16.gmra.mxu0 %v407
        %v949 = vpop.f32.mrf.mxu0
        %v950 = vadd.f32 %v508, %v949
        %v951 = vpop.f32.mrf.mxu0
        %v952 = vadd.f32 %v512, %v951
        %v953 = vpop.f32.mrf.mxu0
        %v954 = vadd.f32 %v508, %v953
        %v955 = vpop.f32.mrf.mxu0
        %v956 = vadd.f32 %v512, %v955
        %957 = vmatprep.mubr.bf16.mxu0 %v412
        %958 = vmatmul.mubr.bf16.gmra.mxu0 %v411
        %v959 = vpop.f32.mrf.mxu0
        %v960 = vadd.f32 %v508, %v959
        %v961 = vpop.f32.mrf.mxu0
        %v962 = vadd.f32 %v512, %v961
        %v963 = vpop.f32.mrf.mxu0
        %v964 = vadd.f32 %v508, %v963
        %v965 = vpop.f32.mrf.mxu0
        %v966 = vadd.f32 %v512, %v965
        %967 = vmatprep.mubr.bf16.mxu0 %v416
        %968 = vmatmul.mubr.bf16.gmra.mxu0 %v415
        %v969 = vpop.f32.mrf.mxu0
        %v970 = vadd.f32 %v508, %v969
        %v971 = vpop.f32.mrf.mxu0
        %v972 = vadd.f32 %v512, %v971
        %v973 = vpop.f32.mrf.mxu0
        %v974 = vadd.f32 %v508, %v973
        %v975 = vpop.f32.mrf.mxu0
        %v976 = vadd.f32 %v512, %v975
        %977 = vmatprep.mubr.bf16.mxu0 %v420
        %978 = vmatmul.mubr.bf16.gmra.mxu0 %v419
        %v979 = vpop.f32.mrf.mxu0
        %v980 = vadd.f32 %v508, %v979
        %v981 = vpop.f32.mrf.mxu0
        %v982 = vadd.f32 %v512, %v981
        %v983 = vpop.f32.mrf.mxu0
        %v984 = vadd.f32 %v508, %v983
        %v985 = vpop.f32.mrf.mxu0
        %v986 = vadd.f32 %v512, %v985
        %987 = vmatprep.mubr.bf16.mxu0 %v424
        %988 = vmatmul.mubr.bf16.gmra.mxu0 %v423
        %v989 = vpop.f32.mrf.mxu0
        %v990 = vadd.f32 %v508, %v989
        %v991 = vpop.f32.mrf.mxu0
        %v992 = vadd.f32 %v512, %v991
        %v993 = vpop.f32.mrf.mxu0
        %v994 = vadd.f32 %v508, %v993
        %v995 = vpop.f32.mrf.mxu0
        %v996 = vadd.f32 %v512, %v995
        %997 = vmatprep.mubr.bf16.mxu0 %v428
        %998 = vmatmul.mubr.bf16.gmra.mxu0 %v427
        %v999 = vpop.f32.mrf.mxu0
        %v1000 = vadd.f32 %v508, %v999
        %v1001 = vpop.f32.mrf.mxu0
        %v1002 = vadd.f32 %v512, %v1001
        %v1003 = vpop.f32.mrf.mxu0
        %v1004 = vadd.f32 %v508, %v1003
        %v1005 = vpop.f32.mrf.mxu0
        %v1006 = vadd.f32 %v512, %v1005
        %1007 = vmatprep.mubr.bf16.mxu0 %v432
        %1008 = vmatmul.mubr.bf16.gmra.mxu0 %v431
        %v1009 = vpop.f32.mrf.mxu0
        %v1010 = vadd.f32 %v508, %v1009
        %v1011 = vpop.f32.mrf.mxu0
        %v1012 = vadd.f32 %v512, %v1011
        %v1013 = vpop.f32.mrf.mxu0
        %v1014 = vadd.f32 %v508, %v1013
        %v1015 = vpop.f32.mrf.mxu0
        %v1016 = vadd.f32 %v512, %v1015
        %1017 = vmatprep.mubr.bf16.mxu0 %v436
        %1018 = vmatmul.mubr.bf16.gmra.mxu0 %v435
        %v1019 = vpop.f32.mrf.mxu0
        %v1020 = vadd.f32 %v508, %v1019
        %v1021 = vpop.f32.mrf.mxu0
        %v1022 = vadd.f32 %v512, %v1021
        %v1023 = vpop.f32.mrf.mxu0
        %v1024 = vadd.f32 %v508, %v1023
        %v1025 = vpop.f32.mrf.mxu0
        %v1026 = vadd.f32 %v512, %v1025
        %1027 = vdwg.mxu0
        %1028 = vmatprep.subr.bf16.mxu0 %v754
        %1029 = vmatpush1.bf16.msra.mxu0 %v753
        %1030 = vmatprep.subr.bf16.mxu0 %v752
        %1031 = vmatpush1.bf16.msra.mxu0 %v751
        %1032 = vmatprep.subr.bf16.mxu0 %v750
        %1033 = vmatpush1.bf16.msra.mxu0 %v749
        %1034 = vmatprep.subr.bf16.mxu0 %v748
        %1035 = vmatpush1.bf16.msra.mxu0 %v747
        %1036 = vmatprep.subr.bf16.mxu0 %v746
        %1037 = vmatpush1.bf16.msra.mxu0 %v745
        %1038 = vmatprep.subr.bf16.mxu0 %v744
        %1039 = vmatpush1.bf16.msra.mxu0 %v743
        %1040 = vmatprep.subr.bf16.mxu0 %v742
        %1041 = vmatpush1.bf16.msra.mxu0 %v741
        %1042 = vmatprep.subr.bf16.mxu0 %v740
        %1043 = vmatpush1.bf16.msra.mxu0 %v739
        %1044 = vmatprep.subr.bf16.mxu0 %v770
        %1045 = vmatpush2.bf16.msra.mxu0 %v769
        %1046 = vmatprep.subr.bf16.mxu0 %v768
        %1047 = vmatpush2.bf16.msra.mxu0 %v767
        %1048 = vmatprep.subr.bf16.mxu0 %v766
        %1049 = vmatpush2.bf16.msra.mxu0 %v765
        %1050 = vmatprep.subr.bf16.mxu0 %v764
        %1051 = vmatpush2.bf16.msra.mxu0 %v763
        %1052 = vmatprep.subr.bf16.mxu0 %v762
        %1053 = vmatpush2.bf16.msra.mxu0 %v761
        %1054 = vmatprep.subr.bf16.mxu0 %v760
        %1055 = vmatpush2.bf16.msra.mxu0 %v759
        %1056 = vmatprep.subr.bf16.mxu0 %v758
        %1057 = vmatpush2.bf16.msra.mxu0 %v757
        %1058 = vmatprep.subr.bf16.mxu0 %v756
        %1059 = vmatpush2.bf16.msra.mxu0 %v755
        %1060 = vmatprep.mubr.bf16.mxu0 %v378
        %1061 = vmatmul.mubr.bf16.gmra.mxu0 %v377
        %v1062 = vpop.f32.mrf.mxu0
        %v1063 = vadd.f32 %v870, %v1062
        %v1064 = vpop.f32.mrf.mxu0
        %v1065 = vadd.f32 %v872, %v1064
        %v1066 = vpop.f32.mrf.mxu0
        %v1067 = vadd.f32 %v874, %v1066
        %v1068 = vpop.f32.mrf.mxu0
        %v1069 = vadd.f32 %v876, %v1068
        %1070 = vmatprep.mubr.bf16.mxu0 %v382
        %1071 = vmatmul.mubr.bf16.gmra.mxu0 %v381
        %v1072 = vpop.f32.mrf.mxu0
        %v1073 = vadd.f32 %v880, %v1072
        %v1074 = vpop.f32.mrf.mxu0
        %v1075 = vadd.f32 %v882, %v1074
        %v1076 = vpop.f32.mrf.mxu0
        %v1077 = vadd.f32 %v884, %v1076
        %v1078 = vpop.f32.mrf.mxu0
        %v1079 = vadd.f32 %v886, %v1078
        %1080 = vmatprep.mubr.bf16.mxu0 %v386
        %1081 = vmatmul.mubr.bf16.gmra.mxu0 %v385
        %v1082 = vpop.f32.mrf.mxu0
        %v1083 = vadd.f32 %v890, %v1082
        %v1084 = vpop.f32.mrf.mxu0
        %v1085 = vadd.f32 %v892, %v1084
        %v1086 = vpop.f32.mrf.mxu0
        %v1087 = vadd.f32 %v894, %v1086
        %v1088 = vpop.f32.mrf.mxu0
        %v1089 = vadd.f32 %v896, %v1088
        %1090 = vmatprep.mubr.bf16.mxu0 %v390
        %1091 = vmatmul.mubr.bf16.gmra.mxu0 %v389
        %v1092 = vpop.f32.mrf.mxu0
        %v1093 = vadd.f32 %v900, %v1092
        %v1094 = vpop.f32.mrf.mxu0
        %v1095 = vadd.f32 %v902, %v1094
        %v1096 = vpop.f32.mrf.mxu0
        %v1097 = vadd.f32 %v904, %v1096
        %v1098 = vpop.f32.mrf.mxu0
        %v1099 = vadd.f32 %v906, %v1098
        %1100 = vmatprep.mubr.bf16.mxu0 %v394
        %1101 = vmatmul.mubr.bf16.gmra.mxu0 %v393
        %v1102 = vpop.f32.mrf.mxu0
        %v1103 = vadd.f32 %v910, %v1102
        %v1104 = vpop.f32.mrf.mxu0
        %v1105 = vadd.f32 %v912, %v1104
        %v1106 = vpop.f32.mrf.mxu0
        %v1107 = vadd.f32 %v914, %v1106
        %v1108 = vpop.f32.mrf.mxu0
        %v1109 = vadd.f32 %v916, %v1108
        %1110 = vmatprep.mubr.bf16.mxu0 %v398
        %1111 = vmatmul.mubr.bf16.gmra.mxu0 %v397
        %v1112 = vpop.f32.mrf.mxu0
        %v1113 = vadd.f32 %v920, %v1112
        %v1114 = vpop.f32.mrf.mxu0
        %v1115 = vadd.f32 %v922, %v1114
        %v1116 = vpop.f32.mrf.mxu0
        %v1117 = vadd.f32 %v924, %v1116
        %v1118 = vpop.f32.mrf.mxu0
        %v1119 = vadd.f32 %v926, %v1118
        %1120 = vmatprep.mubr.bf16.mxu0 %v402
        %1121 = vmatmul.mubr.bf16.gmra.mxu0 %v401
        %v1122 = vpop.f32.mrf.mxu0
        %v1123 = vadd.f32 %v930, %v1122
        %v1124 = vpop.f32.mrf.mxu0
        %v1125 = vadd.f32 %v932, %v1124
        %v1126 = vpop.f32.mrf.mxu0
        %v1127 = vadd.f32 %v934, %v1126
        %v1128 = vpop.f32.mrf.mxu0
        %v1129 = vadd.f32 %v936, %v1128
        %1130 = vmatprep.mubr.bf16.mxu0 %v406
        %1131 = vmatmul.mubr.bf16.gmra.mxu0 %v405
        %v1132 = vpop.f32.mrf.mxu0
        %v1133 = vadd.f32 %v940, %v1132
        %v1134 = vpop.f32.mrf.mxu0
        %v1135 = vadd.f32 %v942, %v1134
        %v1136 = vpop.f32.mrf.mxu0
        %v1137 = vadd.f32 %v944, %v1136
        %v1138 = vpop.f32.mrf.mxu0
        %v1139 = vadd.f32 %v946, %v1138
        %1140 = vmatprep.mubr.bf16.mxu0 %v410
        %1141 = vmatmul.mubr.bf16.gmra.mxu0 %v409
        %v1142 = vpop.f32.mrf.mxu0
        %v1143 = vadd.f32 %v950, %v1142
        %v1144 = vpop.f32.mrf.mxu0
        %v1145 = vadd.f32 %v952, %v1144
        %v1146 = vpop.f32.mrf.mxu0
        %v1147 = vadd.f32 %v954, %v1146
        %v1148 = vpop.f32.mrf.mxu0
        %v1149 = vadd.f32 %v956, %v1148
        %1150 = vmatprep.mubr.bf16.mxu0 %v414
        %1151 = vmatmul.mubr.bf16.gmra.mxu0 %v413
        %v1152 = vpop.f32.mrf.mxu0
        %v1153 = vadd.f32 %v960, %v1152
        %v1154 = vpop.f32.mrf.mxu0
        %v1155 = vadd.f32 %v962, %v1154
        %v1156 = vpop.f32.mrf.mxu0
        %v1157 = vadd.f32 %v964, %v1156
        %v1158 = vpop.f32.mrf.mxu0
        %v1159 = vadd.f32 %v966, %v1158
        %1160 = vmatprep.mubr.bf16.mxu0 %v418
        %1161 = vmatmul.mubr.bf16.gmra.mxu0 %v417
        %v1162 = vpop.f32.mrf.mxu0
        %v1163 = vadd.f32 %v970, %v1162
        %v1164 = vpop.f32.mrf.mxu0
        %v1165 = vadd.f32 %v972, %v1164
        %v1166 = vpop.f32.mrf.mxu0
        %v1167 = vadd.f32 %v974, %v1166
        %v1168 = vpop.f32.mrf.mxu0
        %v1169 = vadd.f32 %v976, %v1168
        %1170 = vmatprep.mubr.bf16.mxu0 %v422
        %1171 = vmatmul.mubr.bf16.gmra.mxu0 %v421
        %v1172 = vpop.f32.mrf.mxu0
        %v1173 = vadd.f32 %v980, %v1172
        %v1174 = vpop.f32.mrf.mxu0
        %v1175 = vadd.f32 %v982, %v1174
        %v1176 = vpop.f32.mrf.mxu0
        %v1177 = vadd.f32 %v984, %v1176
        %v1178 = vpop.f32.mrf.mxu0
        %v1179 = vadd.f32 %v986, %v1178
        %1180 = vmatprep.mubr.bf16.mxu0 %v426
        %1181 = vmatmul.mubr.bf16.gmra.mxu0 %v425
        %v1182 = vpop.f32.mrf.mxu0
        %v1183 = vadd.f32 %v990, %v1182
        %v1184 = vpop.f32.mrf.mxu0
        %v1185 = vadd.f32 %v992, %v1184
        %v1186 = vpop.f32.mrf.mxu0
        %v1187 = vadd.f32 %v994, %v1186
        %v1188 = vpop.f32.mrf.mxu0
        %v1189 = vadd.f32 %v996, %v1188
        %1190 = vmatprep.mubr.bf16.mxu0 %v430
        %1191 = vmatmul.mubr.bf16.gmra.mxu0 %v429
        %v1192 = vpop.f32.mrf.mxu0
        %v1193 = vadd.f32 %v1000, %v1192
        %v1194 = vpop.f32.mrf.mxu0
        %v1195 = vadd.f32 %v1002, %v1194
        %v1196 = vpop.f32.mrf.mxu0
        %v1197 = vadd.f32 %v1004, %v1196
        %v1198 = vpop.f32.mrf.mxu0
        %v1199 = vadd.f32 %v1006, %v1198
        %1200 = vmatprep.mubr.bf16.mxu0 %v434
        %1201 = vmatmul.mubr.bf16.gmra.mxu0 %v433
        %v1202 = vpop.f32.mrf.mxu0
        %v1203 = vadd.f32 %v1010, %v1202
        %v1204 = vpop.f32.mrf.mxu0
        %v1205 = vadd.f32 %v1012, %v1204
        %v1206 = vpop.f32.mrf.mxu0
        %v1207 = vadd.f32 %v1014, %v1206
        %v1208 = vpop.f32.mrf.mxu0
        %v1209 = vadd.f32 %v1016, %v1208
        %1210 = vmatprep.mubr.bf16.mxu0 %v438
        %1211 = vmatmul.mubr.bf16.gmra.mxu0 %v437
        %v1212 = vpop.f32.mrf.mxu0
        %v1213 = vadd.f32 %v1020, %v1212
        %v1214 = vpop.f32.mrf.mxu0
        %v1215 = vadd.f32 %v1022, %v1214
        %v1216 = vpop.f32.mrf.mxu0
        %v1217 = vadd.f32 %v1024, %v1216
        %v1218 = vpop.f32.mrf.mxu0
        %v1219 = vadd.f32 %v1026, %v1218
        %1220 = vdwg.mxu0
        %v1221 = vtanh.pop %v1063
        %v1222 = vtanh.pop %v1067
        %v1223 = vtanh.pop %v1073
        %v1224 = vtanh.pop %v1077
        %v1225 = vtanh.pop %v1083
        %v1226 = vtanh.pop %v1087
        %v1227 = vtanh.pop %v1093
        %v1228 = vtanh.pop %v1097
        %v1229 = vtanh.pop %v1103
        %v1230 = vtanh.pop %v1107
        %v1231 = vtanh.pop %v1113
        %v1232 = vtanh.pop %v1117
        %v1233 = vtanh.pop %v1123
        %v1234 = vtanh.pop %v1127
        %v1235 = vtanh.pop %v1133
        %v1236 = vtanh.pop %v1137
        %v1237 = vtanh.pop %v1143
        %v1238 = vtanh.pop %v1147
        %v1239 = vtanh.pop %v1153
        %v1240 = vtanh.pop %v1157
        %v1241 = vtanh.pop %v1163
        %v1242 = vtanh.pop %v1167
        %v1243 = vtanh.pop %v1173
        %v1244 = vtanh.pop %v1177
        %v1245 = vtanh.pop %v1183
        %v1246 = vtanh.pop %v1187
        %v1247 = vtanh.pop %v1193
        %v1248 = vtanh.pop %v1197
        %v1249 = vtanh.pop %v1203
        %v1250 = vtanh.pop %v1207
        %v1251 = vtanh.pop %v1213
        %v1252 = vtanh.pop %v1217
        %v1253 = vmul.f32 %v1065, 0.5
        %v1254 = vmul.f32 %v1069, 0.5
        %v1255 = vmul.f32 %v1075, 0.5
        %v1256 = vmul.f32 %v1079, 0.5
        %v1257 = vmul.f32 %v1085, 0.5
        %v1258 = vmul.f32 %v1089, 0.5
        %v1259 = vmul.f32 %v1095, 0.5
        %v1260 = vmul.f32 %v1099, 0.5
        %v1261 = vmul.f32 %v1105, 0.5
        %v1262 = vmul.f32 %v1109, 0.5
        %v1263 = vmul.f32 %v1115, 0.5
        %v1264 = vmul.f32 %v1119, 0.5
        %v1265 = vmul.f32 %v1125, 0.5
        %v1266 = vmul.f32 %v1129, 0.5
        %v1267 = vmul.f32 %v1135, 0.5
        %v1268 = vmul.f32 %v1139, 0.5
        %v1269 = vmul.f32 %v1145, 0.5
        %v1270 = vmul.f32 %v1149, 0.5
        %v1271 = vmul.f32 %v1155, 0.5
        %v1272 = vmul.f32 %v1159, 0.5
        %v1273 = vmul.f32 %v1165, 0.5
        %v1274 = vmul.f32 %v1169, 0.5
        %v1275 = vmul.f32 %v1175, 0.5
        %v1276 = vmul.f32 %v1179, 0.5
        %v1277 = vmul.f32 %v1185, 0.5
        %v1278 = vmul.f32 %v1189, 0.5
        %v1279 = vmul.f32 %v1195, 0.5
        %v1280 = vmul.f32 %v1199, 0.5
        %v1281 = vmul.f32 %v1205, 0.5
        %v1282 = vmul.f32 %v1209, 0.5
        %v1283 = vmul.f32 %v1215, 0.5
        %v1284 = vmul.f32 %v1219, 0.5
        %v1285 = vtanh.pop %v1253
        %v1286 = vtanh.pop %v1254
        %v1287 = vtanh.pop %v1255
        %v1288 = vtanh.pop %v1256
        %v1289 = vtanh.pop %v1257
        %v1290 = vtanh.pop %v1258
        %v1291 = vtanh.pop %v1259
        %v1292 = vtanh.pop %v1260
        %v1293 = vtanh.pop %v1261
        %v1294 = vtanh.pop %v1262
        %v1295 = vtanh.pop %v1263
        %v1296 = vtanh.pop %v1264
        %v1297 = vtanh.pop %v1265
        %v1298 = vtanh.pop %v1266
        %v1299 = vtanh.pop %v1267
        %v1300 = vtanh.pop %v1268
        %v1301 = vtanh.pop %v1269
        %v1302 = vtanh.pop %v1270
        %v1303 = vtanh.pop %v1271
        %v1304 = vtanh.pop %v1272
        %v1305 = vtanh.pop %v1273
        %v1306 = vtanh.pop %v1274
        %v1307 = vtanh.pop %v1275
        %v1308 = vtanh.pop %v1276
        %v1309 = vtanh.pop %v1277
        %v1310 = vtanh.pop %v1278
        %v1311 = vtanh.pop %v1279
        %v1312 = vtanh.pop %v1280
        %v1313 = vtanh.pop %v1281
        %v1314 = vtanh.pop %v1282
        %v1315 = vtanh.pop %v1283
        %v1316 = vtanh.pop %v1284
        %v1317 = vadd.f32 %v1285, 1.0
        %v1318 = vadd.f32 %v1286, 1.0
        %v1319 = vadd.f32 %v1287, 1.0
        %v1320 = vadd.f32 %v1288, 1.0
        %v1321 = vadd.f32 %v1289, 1.0
        %v1322 = vadd.f32 %v1290, 1.0
        %v1323 = vadd.f32 %v1291, 1.0
        %v1324 = vadd.f32 %v1292, 1.0
        %v1325 = vadd.f32 %v1293, 1.0
        %v1326 = vadd.f32 %v1294, 1.0
        %v1327 = vadd.f32 %v1295, 1.0
        %v1328 = vadd.f32 %v1296, 1.0
        %v1329 = vadd.f32 %v1297, 1.0
        %v1330 = vadd.f32 %v1298, 1.0
        %v1331 = vadd.f32 %v1299, 1.0
        %v1332 = vadd.f32 %v1300, 1.0
        %v1333 = vadd.f32 %v1301, 1.0
        %v1334 = vadd.f32 %v1302, 1.0
        %v1335 = vadd.f32 %v1303, 1.0
        %v1336 = vadd.f32 %v1304, 1.0
        %v1337 = vadd.f32 %v1305, 1.0
        %v1338 = vadd.f32 %v1306, 1.0
        %v1339 = vadd.f32 %v1307, 1.0
        %v1340 = vadd.f32 %v1308, 1.0
        %v1341 = vadd.f32 %v1309, 1.0
        %v1342 = vadd.f32 %v1310, 1.0
        %v1343 = vadd.f32 %v1311, 1.0
        %v1344 = vadd.f32 %v1312, 1.0
        %v1345 = vadd.f32 %v1313, 1.0
        %v1346 = vadd.f32 %v1314, 1.0
        %v1347 = vadd.f32 %v1315, 1.0
        %v1348 = vadd.f32 %v1316, 1.0
        %v1349 = vmul.f32 %v1317, 0.5
        %v1350 = vmul.f32 %v1318, 0.5
        %v1351 = vmul.f32 %v1319, 0.5
        %v1352 = vmul.f32 %v1320, 0.5
        %v1353 = vmul.f32 %v1321, 0.5
        %v1354 = vmul.f32 %v1322, 0.5
        %v1355 = vmul.f32 %v1323, 0.5
        %v1356 = vmul.f32 %v1324, 0.5
        %v1357 = vmul.f32 %v1325, 0.5
        %v1358 = vmul.f32 %v1326, 0.5
        %v1359 = vmul.f32 %v1327, 0.5
        %v1360 = vmul.f32 %v1328, 0.5
        %v1361 = vmul.f32 %v1329, 0.5
        %v1362 = vmul.f32 %v1330, 0.5
        %v1363 = vmul.f32 %v1331, 0.5
        %v1364 = vmul.f32 %v1332, 0.5
        %v1365 = vmul.f32 %v1333, 0.5
        %v1366 = vmul.f32 %v1334, 0.5
        %v1367 = vmul.f32 %v1335, 0.5
        %v1368 = vmul.f32 %v1336, 0.5
        %v1369 = vmul.f32 %v1337, 0.5
        %v1370 = vmul.f32 %v1338, 0.5
        %v1371 = vmul.f32 %v1339, 0.5
        %v1372 = vmul.f32 %v1340, 0.5
        %v1373 = vmul.f32 %v1341, 0.5
        %v1374 = vmul.f32 %v1342, 0.5
        %v1375 = vmul.f32 %v1343, 0.5
        %v1376 = vmul.f32 %v1344, 0.5
        %v1377 = vmul.f32 %v1345, 0.5
        %v1378 = vmul.f32 %v1346, 0.5
        %v1379 = vmul.f32 %v1347, 0.5
        %v1380 = vmul.f32 %v1348, 0.5
        %v1381 = vmul.f32 %v1221, %v1349
        %v1382 = vmul.f32 %v1222, %v1350
        %v1383 = vmul.f32 %v1223, %v1351
        %v1384 = vmul.f32 %v1224, %v1352
        %v1385 = vmul.f32 %v1225, %v1353
        %v1386 = vmul.f32 %v1226, %v1354
        %v1387 = vmul.f32 %v1227, %v1355
        %v1388 = vmul.f32 %v1228, %v1356
        %v1389 = vmul.f32 %v1229, %v1357
        %v1390 = vmul.f32 %v1230, %v1358
        %v1391 = vmul.f32 %v1231, %v1359
        %v1392 = vmul.f32 %v1232, %v1360
        %v1393 = vmul.f32 %v1233, %v1361
        %v1394 = vmul.f32 %v1234, %v1362
        %v1395 = vmul.f32 %v1235, %v1363
        %v1396 = vmul.f32 %v1236, %v1364
        %v1397 = vmul.f32 %v1237, %v1365
        %v1398 = vmul.f32 %v1238, %v1366
        %v1399 = vmul.f32 %v1239, %v1367
        %v1400 = vmul.f32 %v1240, %v1368
        %v1401 = vmul.f32 %v1241, %v1369
        %v1402 = vmul.f32 %v1242, %v1370
        %v1403 = vmul.f32 %v1243, %v1371
        %v1404 = vmul.f32 %v1244, %v1372
        %v1405 = vmul.f32 %v1245, %v1373
        %v1406 = vmul.f32 %v1246, %v1374
        %v1407 = vmul.f32 %v1247, %v1375
        %v1408 = vmul.f32 %v1248, %v1376
        %v1409 = vmul.f32 %v1249, %v1377
        %v1410 = vmul.f32 %v1250, %v1378
        %v1411 = vmul.f32 %v1251, %v1379
        %v1412 = vmul.f32 %v1252, %v1380
        %v1413 = vpack.c.bf16 %v1382, %v1381
        %v1414 = vpack.c.bf16 %v1384, %v1383
        %v1415 = vpack.c.bf16 %v1386, %v1385
        %v1416 = vpack.c.bf16 %v1388, %v1387
        %v1417 = vpack.c.bf16 %v1390, %v1389
        %v1418 = vpack.c.bf16 %v1392, %v1391
        %v1419 = vpack.c.bf16 %v1394, %v1393
        %v1420 = vpack.c.bf16 %v1396, %v1395
        %v1421 = vpack.c.bf16 %v1398, %v1397
        %v1422 = vpack.c.bf16 %v1400, %v1399
        %v1423 = vpack.c.bf16 %v1402, %v1401
        %v1424 = vpack.c.bf16 %v1404, %v1403
        %v1425 = vpack.c.bf16 %v1406, %v1405
        %v1426 = vpack.c.bf16 %v1408, %v1407
        %v1427 = vpack.c.bf16 %v1410, %v1409
        %v1428 = vpack.c.bf16 %v1412, %v1411
        %v1429 = vld [vmem:[%s3] sm:$0x1]
        %1430 = vmatprep.subr.bf16.mxu0 0
        %1431 = vmatpush1.bf16.xpose.msra.mxu0 %v1420
        %1432 = vmatprep.subr.bf16.mxu0 0
        %1433 = vmatpush1.bf16.xpose.msra.mxu0 %v1419
        %1434 = vmatprep.subr.bf16.mxu0 0
        %1435 = vmatpush1.bf16.xpose.msra.mxu0 %v1418
        %1436 = vmatprep.subr.bf16.mxu0 0
        %1437 = vmatpush1.bf16.xpose.msra.mxu0 %v1417
        %1438 = vmatprep.subr.bf16.mxu0 0
        %1439 = vmatpush1.bf16.xpose.msra.mxu0 %v1416
        %1440 = vmatprep.subr.bf16.mxu0 0
        %1441 = vmatpush1.bf16.xpose.msra.mxu0 %v1415
        %1442 = vmatprep.subr.bf16.mxu0 0
        %1443 = vmatpush1.bf16.xpose.msra.mxu0 %v1414
        %1444 = vmatprep.subr.bf16.mxu0 0
        %1445 = vmatpush1.bf16.xpose.msra.mxu0 %v1413
        %1446 = vmatprep.subr.bf16.mxu0 0
        %1447 = vmatpush2.bf16.xpose.msra.mxu0 %v1428
        %1448 = vmatprep.subr.bf16.mxu0 0
        %1449 = vmatpush2.bf16.xpose.msra.mxu0 %v1427
        %1450 = vmatprep.subr.bf16.mxu0 0
        %1451 = vmatpush2.bf16.xpose.msra.mxu0 %v1426
        %1452 = vmatprep.subr.bf16.mxu0 0
        %1453 = vmatpush2.bf16.xpose.msra.mxu0 %v1425
        %1454 = vmatprep.subr.bf16.mxu0 0
        %1455 = vmatpush2.bf16.xpose.msra.mxu0 %v1424
        %1456 = vmatprep.subr.bf16.mxu0 0
        %1457 = vmatpush2.bf16.xpose.msra.mxu0 %v1423
        %1458 = vmatprep.subr.bf16.mxu0 0
        %1459 = vmatpush2.bf16.xpose.msra.mxu0 %v1422
        %1460 = vmatprep.subr.bf16.mxu0 0
        %1461 = vmatpush2.bf16.xpose.msra.mxu0 %v1421
        %1462 = vmatprep.mubr.bf16.mxu0 0
        %1463 = vmatmul.mubr.bf16.gmra.mxu0 %v1429
        %v1464 = vpop.f32.mrf.mxu0
        %v1465 = vadd.f32 0.0, %v1464
        %v1466 = vpop.f32.mrf.mxu0
        %v1467 = vadd.f32 0.0, %v1466
        %v1468 = vpop.f32.mrf.mxu0
        %v1469 = vpop.f32.mrf.mxu0
        %1470 = vdwg.mxu0
        %v1473 = vcombine.low %v1465, %v1467
        %v1475 = vunpack.c.l.s4 1966171168
        %v1476 = vunpack.c.0.s8 %v1475
        %v1477 = vlaneseq
        %v1478 = vshrl.u32 %v1477, 7
        %v1479 = vsub.s32 %v1476, %v1478
        %v1480 = vrot.slane %v1473, %v1479
        %v1482 = vunpack.c.l.s4 1966171168
        %v1483 = vunpack.c.0.s8 %v1482
        %v1484 = vlaneseq
        %v1485 = vshrl.u32 %v1484, 7
        %v1486 = vsub.s32 %v1483, %v1485
        %v1487 = vrot.slane %v1480, %v1486
        %v1489 = vlaneseq
        %vm1490 = vcmp.ge.s32.totalorder %v1489, 0
        %vm1491 = vcmp.lt.s32.totalorder %v1489, 256
        %vm1492 = vmand %vm1490, %vm1491
        %1493 = vst.msk [vmem:[%s238] sm:$0x3] %vm1492, %v1487
        %s1494 = sand.u32 %s119, 1
        %s1495 = scalar_lea.sflag [#allocation4], %s1494
        %s1496 = sand.u32 %s119, 1
        %s1497 = smul.addr %s1496, 2
        %s1498 = scalar_lea.vmem [#allocation7], %s1497
        // Predicated region
        $region45: #{tpu_custom_call.1} parent=35 // pred_check
          %p1499 = pneg %p129
        $region46: #{tpu_custom_call.1} parent=35 // pred_check_branch
          %1501 = sbr.rel (%p1499) target = $region48
        $region47: #{tpu_custom_call.1} parent=35 // pred_region
          %s1502 = smul.u32 2, %s22
          %s1504 = ssub.s32 32, 32
          %1505 = vsyncadd %s1495, %s1504
          %s1506 = smul.addr %s1502, 16
          %s1507 = scalar_lea.hbm %s4, %s1506
          %s1509 = sshll.u32 %s1498, 4
          %s1510 = int_to_ptr.vmem [resolvable:$true] %s1509
          %1512 = dma.vmem_to_hbm [thread:$0]  %s1510, 32, %s1507, %s1495
        $region48: #{tpu_custom_call.1} parent=35 // pred_fallthru
          _
      $region36: #{tpu_custom_call.1} parent=5 // pred_fallthru
        _
      %p1513 = scmp.le.s32.totalorder 2, %s17
      // Predicated region
      $region49: #{tpu_custom_call.1} parent=5 // pred_check
        %p1514 = pneg %p1513
      $region50: #{tpu_custom_call.1} parent=5 // pred_check_branch
        %1516 = sbr.rel (%p1514) target = $region52
      $region51: #{tpu_custom_call.1} parent=5 // pred_region
        %s1517 = ssub.s32 %s17, 2
        // Predicated region
        $region53: #{tpu_custom_call.1} parent=51 // pred_check
          %p1518 = pneg %p135
        $region54: #{tpu_custom_call.1} parent=51 // pred_check_branch
          %1520 = sbr.rel (%p1518) target = $region56
        $region55: #{tpu_custom_call.1} parent=51 // pred_region
          %s1521 = sand.u32 %s120, 1
          %s1522 = scalar_lea.sflag [#allocation4], %s1521
          %s1523 = sand.u32 %s120, 1
          %s1524 = smul.addr %s1523, 2
          %s1525 = scalar_lea.vmem [#allocation7], %s1524
          %1526 = dma.done %s1522, 32
        $region56: #{tpu_custom_call.1} parent=51 // pred_fallthru
          _
      $region52: #{tpu_custom_call.1} parent=5 // pred_fallthru
        _
    $region6: #{tpu_custom_call.1} parent=1 // loop_footer
      %s21 = sadd.s32 1, %s17
    $region7: #{tpu_custom_call.1} parent=1 // loop_footer_branch
      %16 = sbr.rel target = $region3
    $region8: #{tpu_custom_call.1} parent=1 // loop_exit
      _
    %1527 = vsyncpa [#allocation3], 1
    %s1528 = scalar_lea.sflag [#allocation3], 1
    %1529 = vsyncpa %s1528, 1
    %1530 = vsyncpa [#allocation6], 1
    %1531 = vsyncpa [#allocation4], 1
    %s1532 = scalar_lea.sflag [#allocation4], 1
    %1533 = vsyncpa %s1532, 1

</llo_original>
